<compile_context>
chip_gen: v6e
topology: v6e:2x2x1
jax: 0.10.0
libtpu: 0.0.40
codegen_flags: <defaults>
</compile_context>

<pallas_src>
import math
import functools

import jax
import jax.numpy as jnp
from jax.experimental import pallas as pl
from jax.experimental.pallas import tpu as pltpu

LN_EPS = 1e-5
NEG_INF = -1e9


def _layer_norm(x, gamma, beta):
    mu = jnp.mean(x, axis=-1, keepdims=True)
    var = jnp.mean((x - mu) ** 2, axis=-1, keepdims=True)
    return (x - mu) * jax.lax.rsqrt(var + LN_EPS) * gamma + beta


# ----------------------------------------------------------------------------
# Fused encoder kernel: one grid step = (batch element b, layer l)
# ----------------------------------------------------------------------------
def encoder_kernel(emb_ref, pe_ref, mask_ref,
                   g_ref, b_ref,
                   wq_ref, bq_ref, wk_ref, bk_ref, wv_ref, bv_ref,
                   wo_ref, bo_ref,
                   w1_ref, b1_ref, w2_ref, b2_ref,
                   gf_ref, bf_ref,
                   o_ref,
                   x_sc,
                   *, heads, scale):
    l = pl.program_id(1)
    n_layers = pl.num_programs(1)
    bf16 = jnp.bfloat16

    # ---- at layer 0: x = embedding * sqrt(d_model) + positional encoding ----
    @pl.when(l == 0)
    def _():
        x_sc[...] = emb_ref[0] * scale + pe_ref[...]

    x = x_sc[...]                                    # [S, D] f32, VMEM-resident
    mask = mask_ref[0]                               # [1, S]
    bias = jnp.where(mask > 0, 0.0, NEG_INF)         # additive key bias, [1, S]
    gamma, beta = g_ref[0], b_ref[0]                 # [1, D] (shared by both LNs)

    S, D = x.shape
    H = heads
    dk = D // H
    inv_sqrt_dk = 1.0 / math.sqrt(dk)

    # ---- sublayer 1: LayerNorm -> multi-head attention (heads batched) ------
    xn = _layer_norm(x, gamma, beta)
    xn_h = jnp.broadcast_to(xn[None].astype(bf16), (H, S, D))   # [H, S, D] bf16

    q = jnp.einsum('hsd,hde->hse', xn_h, wq_ref[0],
                   preferred_element_type=jnp.float32) + bq_ref[0]   # [H,S,dk]
    k = jnp.einsum('hsd,hde->hse', xn_h, wk_ref[0],
                   preferred_element_type=jnp.float32) + bk_ref[0]
    v = jnp.einsum('hsd,hde->hse', xn_h, wv_ref[0],
                   preferred_element_type=jnp.float32) + bv_ref[0]

    scores = jnp.einsum('hqe,hke->hqk', q.astype(bf16), k.astype(bf16),
                        preferred_element_type=jnp.float32)          # [H,S,S]
    scores = scores * inv_sqrt_dk + bias[None]       # mask hoisted, single pass
    scores = scores - jnp.max(scores, axis=-1, keepdims=True)
    p = jnp.exp(scores)
    p = p * pl.reciprocal(jnp.sum(p, axis=-1, keepdims=True), approx=True)

    ctx = jnp.einsum('hqk,hke->hqe', p.astype(bf16), v.astype(bf16),
                     preferred_element_type=jnp.float32)             # [H,S,dk]
    out_h = jnp.einsum('hqe,heo->hqo', ctx.astype(bf16), wo_ref[0],
                       preferred_element_type=jnp.float32)           # [H,S,D]
    # concat(heads) @ Wo  ==  sum_h head_h @ Wo[h*dk:(h+1)*dk, :]
    attn = out_h[0]
    for h in range(1, H):                            # H-1 cheap vector adds
        attn = attn + out_h[h]
    attn = attn + bo_ref[0]

    src = x + attn                                   # dropout == identity

    # ---- sublayer 2: LayerNorm (shared params) -> FeedForward -> residual ---
    xn2 = _layer_norm(src, gamma, beta)
    h1 = jnp.dot(xn2.astype(bf16), w1_ref[0],
                 preferred_element_type=jnp.float32) + b1_ref[0]
    h1 = jnp.maximum(h1, 0.0)
    ff = jnp.dot(h1.astype(bf16), w2_ref[0],
                 preferred_element_type=jnp.float32) + b2_ref[0]

    x_new = src + ff
    x_sc[...] = x_new                                # carry to next layer

    # ---- after last layer: final LayerNorm, single store of this batch row --
    @pl.when(l == n_layers - 1)
    def _():
        o_ref[0] = _layer_norm(x_new, gf_ref[...], bf_ref[...])


# ----------------------------------------------------------------------------
# Wrapper: stacks per-layer params, pre-splits heads, runs one pallas_call
# ----------------------------------------------------------------------------
def encoder_forward(src, src_mask, params, d_model, heads):
    scale = math.sqrt(d_model)
    emb = params["tok_embed"][src]        # embedding gather stays in plain JAX
    B, S, D = emb.shape
    H, dk = heads, D // heads
    layers = params["layers"]
    L = len(layers)
    Dff = layers[0]["w1"].shape[1]
    bf16, f32 = jnp.bfloat16, jnp.float32

    pe = params["pe"][:S]

    # Stack per-layer params along a leading L axis; heads are pre-split here
    # (pure layout plumbing) so the kernel never reshapes/transposes.
    def stk(name, dtype=f32):
        return jnp.stack([lp[name] for lp in layers]).astype(dtype)

    def stk_w_heads(name):                # [D, D] -> [L, H, D, dk] bf16
        return jnp.stack([lp[name].reshape(D, H, dk).transpose(1, 0, 2)
                          for lp in layers]).astype(bf16)

    def stk_b_heads(name):                # [1, D] -> [L, H, 1, dk] f32
        return jnp.stack([lp[name].reshape(H, dk)[:, None, :]
                          for lp in layers]).astype(f32)

    gamma, beta = stk("gamma"), stk("beta")                              # [L,1,D]
    wq_h, wk_h, wv_h = stk_w_heads("wq"), stk_w_heads("wk"), stk_w_heads("wv")
    bq_h, bk_h, bv_h = stk_b_heads("bq"), stk_b_heads("bk"), stk_b_heads("bv")
    wo_h = jnp.stack([lp["wo"].reshape(H, dk, D)
                      for lp in layers]).astype(bf16)                    # [L,H,dk,D]
    bo = stk("bo")                                                       # [L,1,D]
    w1, b1 = stk("w1", bf16), stk("b1")                                  # [L,D,Dff]
    w2, b2 = stk("w2", bf16), stk("b2")                                  # [L,Dff,D]

    in_specs = [
        pl.BlockSpec((1, S, D),     lambda b, l: (b, 0, 0)),       # emb
        pl.BlockSpec((S, D),        lambda b, l: (0, 0)),          # pe
        pl.BlockSpec((1, 1, S),     lambda b, l: (b, 0, 0)),       # mask
        pl.BlockSpec((1, 1, D),     lambda b, l: (l, 0, 0)),       # gamma
        pl.BlockSpec((1, 1, D),     lambda b, l: (l, 0, 0)),       # beta
        pl.BlockSpec((1, H, D, dk), lambda b, l: (l, 0, 0, 0)),    # wq_h
        pl.BlockSpec((1, H, 1, dk), lambda b, l: (l, 0, 0, 0)),    # bq_h
        pl.BlockSpec((1, H, D, dk), lambda b, l: (l, 0, 0, 0)),    # wk_h
        pl.BlockSpec((1, H, 1, dk), lambda b, l: (l, 0, 0, 0)),    # bk_h
        pl.BlockSpec((1, H, D, dk), lambda b, l: (l, 0, 0, 0)),    # wv_h
        pl.BlockSpec((1, H, 1, dk), lambda b, l: (l, 0, 0, 0)),    # bv_h
        pl.BlockSpec((1, H, dk, D), lambda b, l: (l, 0, 0, 0)),    # wo_h
        pl.BlockSpec((1, 1, D),     lambda b, l: (l, 0, 0)),       # bo
        pl.BlockSpec((1, D, Dff),   lambda b, l: (l, 0, 0)),       # w1
        pl.BlockSpec((1, 1, Dff),   lambda b, l: (l, 0, 0)),       # b1
        pl.BlockSpec((1, Dff, D),   lambda b, l: (l, 0, 0)),       # w2
        pl.BlockSpec((1, 1, D),     lambda b, l: (l, 0, 0)),       # b2
        pl.BlockSpec((1, D),        lambda b, l: (0, 0)),          # gamma_f
        pl.BlockSpec((1, D),        lambda b, l: (0, 0)),          # beta_f
    ]

    return pl.pallas_call(
        functools.partial(encoder_kernel, heads=H, scale=scale),
        out_shape=jax.ShapeDtypeStruct((B, S, D), jnp.float32),
        grid_spec=pltpu.PrefetchScalarGridSpec(
            num_scalar_prefetch=0,
            grid=(B, L),                               # batch parallel, layers arbitrary
            in_specs=in_specs,
            out_specs=pl.BlockSpec((1, S, D), lambda b, l: (b, 0, 0)),
            scratch_shapes=[pltpu.VMEM((S, D), jnp.float32)],      # resident x
        ),
        compiler_params=pltpu.CompilerParams(
            dimension_semantics=("parallel", "arbitrary"),
            vmem_limit_bytes=32 * 1024 * 1024,   # raise when scaling D/Dff/S
        ),
    )(emb, pe, src_mask, gamma, beta,
      wq_h, bq_h, wk_h, bk_h, wv_h, bv_h, wo_h, bo,
      w1, b1, w2, b2,
      params["gamma_f"], params["beta_f"])


# ----------------------------------------------------------------------------
# Pure-JAX reference (independent reshape-to-heads path).  matmul_dtype=bf16
# mirrors the kernel's mixed-precision policy; f32 gives the exact module math.
# ----------------------------------------------------------------------------
def reference_forward(src, src_mask, params, d_model, heads,
                      matmul_dtype=jnp.float32):
    md, f32 = matmul_dtype, jnp.float32
    scale = math.sqrt(d_model)
    x = params["tok_embed"][src] * scale + params["pe"][: src.shape[1]]
    B, S, D = x.shape
    dk = D // heads

    def mm(a, w):
        return jnp.einsum('...d,de->...e', a.astype(md), w.astype(md),
                          preferred_element_type=f32)

    for lp in params["layers"]:
        xn = _layer_norm(x, lp["gamma"], lp["beta"])
        q = (mm(xn, lp["wq"]) + lp["bq"]).reshape(B, S, heads, dk)
        k = (mm(xn, lp["wk"]) + lp["bk"]).reshape(B, S, heads, dk)
        v = (mm(xn, lp["wv"]) + lp["bv"]).reshape(B, S, heads, dk)
        scores = jnp.einsum("bqhd,bkhd->bhqk", q.astype(md), k.astype(md),
                            preferred_element_type=f32) / math.sqrt(dk)
        m = src_mask[:, None, :, :]                  # [B,1,1,S]
        scores = jnp.where(m > 0, scores, NEG_INF)
        p = jax.nn.softmax(scores, axis=-1)
        o = jnp.einsum("bhqk,bkhd->bqhd", p.astype(md), v.astype(md),
                       preferred_element_type=f32).reshape(B, S, D)
        x = x + (mm(o, lp["wo"]) + lp["bo"])
        xn2 = _layer_norm(x, lp["gamma"], lp["beta"])
        h1 = jnp.maximum(mm(xn2, lp["w1"]) + lp["b1"], 0.0)
        x = x + (mm(h1, lp["w2"]) + lp["b2"])
    return _layer_norm(x, params["gamma_f"], params["beta_f"])


# ----------------------------------------------------------------------------
def make_pe_table(max_len, d_model):
    pos = jnp.arange(max_len, dtype=jnp.float32)[:, None]
    div = jnp.exp(jnp.arange(0, d_model, 2, dtype=jnp.float32)
                  * (-math.log(10000.0) / d_model))
    pe = jnp.zeros((max_len, d_model), jnp.float32)
    pe = pe.at[:, 0::2].set(jnp.sin(pos * div))
    pe = pe.at[:, 1::2].set(jnp.cos(pos * div))
    return pe


def init_params(key, vocab, d_model, n_layers, d_ff, max_len):
    def nrm(k, shape, s=0.1):
        return jax.random.normal(k, shape, jnp.float32) * s

    keys = jax.random.split(key, 2 + n_layers)
    params = {
        "tok_embed": nrm(keys[0], (vocab, d_model), 0.5),
        "pe": make_pe_table(max_len, d_model),
        "gamma_f": jnp.ones((1, d_model), jnp.float32),
        "beta_f": jnp.zeros((1, d_model), jnp.float32),
        "layers": [],
    }
    for i in range(n_layers):
        lk = jax.random.split(keys[2 + i], 8)
        params["layers"].append({
            "gamma": jnp.ones((1, d_model), jnp.float32),
            "beta": jnp.zeros((1, d_model), jnp.float32),
            "wq": nrm(lk[0], (d_model, d_model)),
            "bq": jnp.zeros((1, d_model), jnp.float32),
            "wk": nrm(lk[1], (d_model, d_model)),
            "bk": jnp.zeros((1, d_model), jnp.float32),
            "wv": nrm(lk[2], (d_model, d_model)),
            "bv": jnp.zeros((1, d_model), jnp.float32),
            "wo": nrm(lk[3], (d_model, d_model)),
            "bo": nrm(lk[4], (1, d_model), 0.02),
            "w1": nrm(lk[5], (d_model, d_ff)),
            "b1": jnp.zeros((1, d_ff), jnp.float32),
            "w2": nrm(lk[6], (d_ff, d_model)),
            "b2": nrm(lk[7], (1, d_model), 0.02),
        })
    return params


if __name__ == "__main__":
    B, S, D, H, DFF, VOCAB, MAXLEN, NLAYERS = 2, 8, 32, 4, 64, 50, 16, 2

    key = jax.random.PRNGKey(0)
    k_src, k_par = jax.random.split(key)
    src = jax.random.randint(k_src, (B, S), 0, VOCAB, dtype=jnp.int32)
    # mask: keep everything in batch 0, mask the last 2 key positions in batch 1
    src_mask = jnp.ones((B, 1, S), jnp.float32)
    src_mask = src_mask.at[1, 0, S - 2:].set(0.0)

    params = init_params(k_par, VOCAB, D, NLAYERS, DFF, MAXLEN)

    out = jax.block_until_ready(encoder_forward(src, src_mask, params, D, H))
    assert out.shape == (B, S, D)

    # Tight check vs a reference with the same bf16 matmul-input policy,
    # loose check vs the exact f32 module math.
    ref_bf16 = reference_forward(src, src_mask, params, D, H, jnp.bfloat16)
    ref_f32 = reference_forward(src, src_mask, params, D, H, jnp.float32)
    assert jnp.allclose(out, ref_bf16, rtol=1e-2, atol=1e-2), "mismatch vs bf16 reference"
    assert jnp.allclose(out, ref_f32, rtol=5e-2, atol=5e-2), "mismatch vs f32 reference"

    print("KERNEL_OK")
</pallas_src>

<mosaic_0001>
module attributes {stable_mosaic.version = 11 : i64} {
  func.func @encoder_kernel(%arg0: i32, %arg1: i32, %arg2: memref<1x8x32xf32, #tpu.memory_space<vmem>>, %arg3: memref<8x32xf32, #tpu.memory_space<vmem>>, %arg4: memref<1x1x8xf32, #tpu.memory_space<vmem>>, %arg5: memref<1x1x32xf32, #tpu.memory_space<vmem>>, %arg6: memref<1x1x32xf32, #tpu.memory_space<vmem>>, %arg7: memref<1x4x32x8xbf16, #tpu.memory_space<vmem>>, %arg8: memref<1x4x1x8xf32, #tpu.memory_space<vmem>>, %arg9: memref<1x4x32x8xbf16, #tpu.memory_space<vmem>>, %arg10: memref<1x4x1x8xf32, #tpu.memory_space<vmem>>, %arg11: memref<1x4x32x8xbf16, #tpu.memory_space<vmem>>, %arg12: memref<1x4x1x8xf32, #tpu.memory_space<vmem>>, %arg13: memref<1x4x8x32xbf16, #tpu.memory_space<vmem>>, %arg14: memref<1x1x32xf32, #tpu.memory_space<vmem>>, %arg15: memref<1x32x64xbf16, #tpu.memory_space<vmem>>, %arg16: memref<1x1x64xf32, #tpu.memory_space<vmem>>, %arg17: memref<1x64x32xbf16, #tpu.memory_space<vmem>>, %arg18: memref<1x1x32xf32, #tpu.memory_space<vmem>>, %arg19: memref<1x32xf32, #tpu.memory_space<vmem>>, %arg20: memref<1x32xf32, #tpu.memory_space<vmem>>, %arg21: memref<1x8x32xf32, #tpu.memory_space<vmem>>, %arg22: memref<8x32xf32, #tpu.memory_space<vmem>>) attributes {dimension_semantics = [#tpu.dimension_semantics<parallel>, #tpu.dimension_semantics<arbitrary>], iteration_bounds = array<i64: 2, 2>, scalar_prefetch = 0 : i64, scratch_operands = 1 : i64, tpu.core_type = #tpu.core_type<tc>, window_params = [{transform_indices = @transform_0, window_bounds = array<i64: 1, 8, 32>}, {pipeline_mode = #tpu.pipeline_mode<synchronous>, transform_indices = @transform_1, window_bounds = array<i64: 8, 32>}, {transform_indices = @transform_2, window_bounds = array<i64: 1, 1, 8>}, {transform_indices = @transform_3, window_bounds = array<i64: 1, 1, 32>}, {transform_indices = @transform_4, window_bounds = array<i64: 1, 1, 32>}, {transform_indices = @transform_5, window_bounds = array<i64: 1, 4, 32, 8>}, {transform_indices = @transform_6, window_bounds = array<i64: 1, 4, 1, 8>}, {transform_indices = @transform_7, window_bounds = array<i64: 1, 4, 32, 8>}, {transform_indices = @transform_8, window_bounds = array<i64: 1, 4, 1, 8>}, {transform_indices = @transform_9, window_bounds = array<i64: 1, 4, 32, 8>}, {transform_indices = @transform_10, window_bounds = array<i64: 1, 4, 1, 8>}, {transform_indices = @transform_11, window_bounds = array<i64: 1, 4, 8, 32>}, {transform_indices = @transform_12, window_bounds = array<i64: 1, 1, 32>}, {transform_indices = @transform_13, window_bounds = array<i64: 1, 32, 64>}, {transform_indices = @transform_14, window_bounds = array<i64: 1, 1, 64>}, {transform_indices = @transform_15, window_bounds = array<i64: 1, 64, 32>}, {transform_indices = @transform_16, window_bounds = array<i64: 1, 1, 32>}, {pipeline_mode = #tpu.pipeline_mode<synchronous>, transform_indices = @transform_17, window_bounds = array<i64: 1, 32>}, {pipeline_mode = #tpu.pipeline_mode<synchronous>, transform_indices = @transform_18, window_bounds = array<i64: 1, 32>}, {transform_indices = @transform_19, window_bounds = array<i64: 1, 8, 32>}]} {
    %c0_i32 = arith.constant 0 : i32
    %0 = arith.cmpi eq, %arg1, %c0_i32 : i32
    %1 = arith.extui %0 : i1 to i32
    %c0_i32_0 = arith.constant 0 : i32
    %2 = arith.cmpi ne, %1, %c0_i32_0 : i32
    scf.if %2 {
      %c0_81 = arith.constant 0 : index
      %c0_82 = arith.constant 0 : index
      %c0_83 = arith.constant 0 : index
      %148 = vector.load %arg2[%c0_81, %c0_82, %c0_83] : memref<1x8x32xf32, #tpu.memory_space<vmem>>, vector<1x8x32xf32>
      %149 = vector.shape_cast %148 : vector<1x8x32xf32> to vector<8x32xf32>
      %cst_84 = arith.constant 5.65685415 : f32
      %150 = vector.broadcast %cst_84 : f32 to vector<8x32xf32>
      %151 = arith.mulf %149, %150 : vector<8x32xf32>
      %c0_85 = arith.constant 0 : index
      %c0_86 = arith.constant 0 : index
      %152 = vector.load %arg3[%c0_85, %c0_86] : memref<8x32xf32, #tpu.memory_space<vmem>>, vector<8x32xf32>
      %153 = arith.addf %151, %152 : vector<8x32xf32>
      %c0_87 = arith.constant 0 : index
      %c0_88 = arith.constant 0 : index
      %154 = vector.load %arg22[%c0_87, %c0_88] : memref<8x32xf32, #tpu.memory_space<vmem>>, vector<8x32xf32>
      tpu.vector_store %arg22[%c0_87, %c0_88], %153 {strides = array<i32>} : memref<8x32xf32, #tpu.memory_space<vmem>>, vector<8x32xf32>,
    } else {
    }
    %c0 = arith.constant 0 : index
    %c0_1 = arith.constant 0 : index
    %3 = vector.load %arg22[%c0, %c0_1] : memref<8x32xf32, #tpu.memory_space<vmem>>, vector<8x32xf32>
    %c0_2 = arith.constant 0 : index
    %c0_3 = arith.constant 0 : index
    %c0_4 = arith.constant 0 : index
    %4 = vector.load %arg4[%c0_2, %c0_3, %c0_4] : memref<1x1x8xf32, #tpu.memory_space<vmem>>, vector<1x1x8xf32>
    %5 = vector.shape_cast %4 : vector<1x1x8xf32> to vector<1x8xf32>
    %cst = arith.constant 0.000000e+00 : f32
    %6 = vector.broadcast %cst : f32 to vector<1x8xf32>
    %7 = arith.cmpf ogt, %5, %6 : vector<1x8xf32>
    %cst_5 = arith.constant 0.000000e+00 : f32
    %cst_6 = arith.constant -1.000000e+09 : f32
    %8 = vector.broadcast %cst_5 : f32 to vector<1x8xf32>
    %9 = vector.broadcast %cst_6 : f32 to vector<1x8xf32>
    %10 = arith.select %7, %8, %9 : vector<1x8xi1>, vector<1x8xf32>
    %c0_7 = arith.constant 0 : index
    %c0_8 = arith.constant 0 : index
    %c0_9 = arith.constant 0 : index
    %11 = vector.load %arg5[%c0_7, %c0_8, %c0_9] : memref<1x1x32xf32, #tpu.memory_space<vmem>>, vector<1x1x32xf32>
    %12 = vector.shape_cast %11 : vector<1x1x32xf32> to vector<1x32xf32>
    %c0_10 = arith.constant 0 : index
    %c0_11 = arith.constant 0 : index
    %c0_12 = arith.constant 0 : index
    %13 = vector.load %arg6[%c0_10, %c0_11, %c0_12] : memref<1x1x32xf32, #tpu.memory_space<vmem>>, vector<1x1x32xf32>
    %14 = vector.shape_cast %13 : vector<1x1x32xf32> to vector<1x32xf32>
    %cst_13 = arith.constant dense<0.000000e+00> : vector<8xf32>
    %15 = vector.multi_reduction <add>, %3, %cst_13 [1] : vector<8x32xf32> to vector<8xf32>
    %16 = vector.shape_cast %15 : vector<8xf32> to vector<8x1xf32>
    %cst_14 = arith.constant 3.200000e+01 : f32
    %17 = vector.broadcast %cst_14 : f32 to vector<8x1xf32>
    %18 = arith.divf %16, %17 : vector<8x1xf32>
    %19 = vector.broadcast %18 : vector<8x1xf32> to vector<8x32xf32>
    %20 = arith.subf %3, %19 : vector<8x32xf32>
    %21 = arith.mulf %20, %20 : vector<8x32xf32>
    %cst_15 = arith.constant dense<0.000000e+00> : vector<8xf32>
    %22 = vector.multi_reduction <add>, %21, %cst_15 [1] : vector<8x32xf32> to vector<8xf32>
    %23 = vector.shape_cast %22 : vector<8xf32> to vector<8x1xf32>
    %cst_16 = arith.constant 3.200000e+01 : f32
    %24 = vector.broadcast %cst_16 : f32 to vector<8x1xf32>
    %25 = arith.divf %23, %24 : vector<8x1xf32>
    %26 = vector.broadcast %18 : vector<8x1xf32> to vector<8x32xf32>
    %27 = arith.subf %3, %26 : vector<8x32xf32>
    %cst_17 = arith.constant 9.99999974E-6 : f32
    %28 = vector.broadcast %cst_17 : f32 to vector<8x1xf32>
    %29 = arith.addf %25, %28 : vector<8x1xf32>
    %30 = math.rsqrt %29 : vector<8x1xf32>
    %31 = vector.broadcast %30 : vector<8x1xf32> to vector<8x32xf32>
    %32 = arith.mulf %27, %31 : vector<8x32xf32>
    %33 = vector.broadcast %12 : vector<1x32xf32> to vector<8x32xf32>
    %34 = arith.mulf %32, %33 : vector<8x32xf32>
    %35 = vector.broadcast %14 : vector<1x32xf32> to vector<8x32xf32>
    %36 = arith.addf %34, %35 : vector<8x32xf32>
    %37 = vector.shape_cast %36 : vector<8x32xf32> to vector<1x8x32xf32>
    %38 = arith.truncf %37 : vector<1x8x32xf32> to vector<1x8x32xbf16>
    %39 = vector.shape_cast %38 : vector<1x8x32xbf16> to vector<1x8x32xbf16>
    %40 = vector.broadcast %39 : vector<1x8x32xbf16> to vector<4x8x32xbf16>
    %c0_18 = arith.constant 0 : index
    %c0_19 = arith.constant 0 : index
    %c0_20 = arith.constant 0 : index
    %c0_21 = arith.constant 0 : index
    %41 = vector.load %arg7[%c0_18, %c0_19, %c0_20, %c0_21] : memref<1x4x32x8xbf16, #tpu.memory_space<vmem>>, vector<1x4x32x8xbf16>
    %42 = vector.shape_cast %41 : vector<1x4x32x8xbf16> to vector<4x32x8xbf16>
    "tpu.trace_start"() <{level = 10 : i32, message = "hsd,hde->hse"}> : () -> ()
    %cst_22 = arith.constant dense<0.000000e+00> : vector<4x8x8xf32>
    %43 = tpu.matmul %40, %42, %cst_22 {dimension_numbers = #tpu.dot_dimension_numbers<[2], [1], [1], [2], [0, 0, 0, 1, 1, 2], [0], [0]>} : vector<4x8x32xbf16>, vector<4x32x8xbf16>, vector<4x8x8xf32> -> vector<4x8x8xf32>
    "tpu.trace_stop"() : () -> ()
    %c0_23 = arith.constant 0 : index
    %c0_24 = arith.constant 0 : index
    %c0_25 = arith.constant 0 : index
    %c0_26 = arith.constant 0 : index
    %44 = vector.load %arg8[%c0_23, %c0_24, %c0_25, %c0_26] : memref<1x4x1x8xf32, #tpu.memory_space<vmem>>, vector<1x4x1x8xf32>
    %45 = vector.shape_cast %44 : vector<1x4x1x8xf32> to vector<4x1x8xf32>
    %46 = vector.broadcast %45 : vector<4x1x8xf32> to vector<4x8x8xf32>
    %47 = arith.addf %43, %46 : vector<4x8x8xf32>
    %c0_27 = arith.constant 0 : index
    %c0_28 = arith.constant 0 : index
    %c0_29 = arith.constant 0 : index
    %c0_30 = arith.constant 0 : index
    %48 = vector.load %arg9[%c0_27, %c0_28, %c0_29, %c0_30] : memref<1x4x32x8xbf16, #tpu.memory_space<vmem>>, vector<1x4x32x8xbf16>
    %49 = vector.shape_cast %48 : vector<1x4x32x8xbf16> to vector<4x32x8xbf16>
    "tpu.trace_start"() <{level = 10 : i32, message = "hsd,hde->hse"}> : () -> ()
    %cst_31 = arith.constant dense<0.000000e+00> : vector<4x8x8xf32>
    %50 = tpu.matmul %40, %49, %cst_31 {dimension_numbers = #tpu.dot_dimension_numbers<[2], [1], [1], [2], [0, 0, 0, 1, 1, 2], [0], [0]>} : vector<4x8x32xbf16>, vector<4x32x8xbf16>, vector<4x8x8xf32> -> vector<4x8x8xf32>
    "tpu.trace_stop"() : () -> ()
    %c0_32 = arith.constant 0 : index
    %c0_33 = arith.constant 0 : index
    %c0_34 = arith.constant 0 : index
    %c0_35 = arith.constant 0 : index
    %51 = vector.load %arg10[%c0_32, %c0_33, %c0_34, %c0_35] : memref<1x4x1x8xf32, #tpu.memory_space<vmem>>, vector<1x4x1x8xf32>
    %52 = vector.shape_cast %51 : vector<1x4x1x8xf32> to vector<4x1x8xf32>
    %53 = vector.broadcast %52 : vector<4x1x8xf32> to vector<4x8x8xf32>
    %54 = arith.addf %50, %53 : vector<4x8x8xf32>
    %c0_36 = arith.constant 0 : index
    %c0_37 = arith.constant 0 : index
    %c0_38 = arith.constant 0 : index
    %c0_39 = arith.constant 0 : index
    %55 = vector.load %arg11[%c0_36, %c0_37, %c0_38, %c0_39] : memref<1x4x32x8xbf16, #tpu.memory_space<vmem>>, vector<1x4x32x8xbf16>
    %56 = vector.shape_cast %55 : vector<1x4x32x8xbf16> to vector<4x32x8xbf16>
    "tpu.trace_start"() <{level = 10 : i32, message = "hsd,hde->hse"}> : () -> ()
    %cst_40 = arith.constant dense<0.000000e+00> : vector<4x8x8xf32>
    %57 = tpu.matmul %40, %56, %cst_40 {dimension_numbers = #tpu.dot_dimension_numbers<[2], [1], [1], [2], [0, 0, 0, 1, 1, 2], [0], [0]>} : vector<4x8x32xbf16>, vector<4x32x8xbf16>, vector<4x8x8xf32> -> vector<4x8x8xf32>
    "tpu.trace_stop"() : () -> ()
    %c0_41 = arith.constant 0 : index
    %c0_42 = arith.constant 0 : index
    %c0_43 = arith.constant 0 : index
    %c0_44 = arith.constant 0 : index
    %58 = vector.load %arg12[%c0_41, %c0_42, %c0_43, %c0_44] : memref<1x4x1x8xf32, #tpu.memory_space<vmem>>, vector<1x4x1x8xf32>
    %59 = vector.shape_cast %58 : vector<1x4x1x8xf32> to vector<4x1x8xf32>
    %60 = vector.broadcast %59 : vector<4x1x8xf32> to vector<4x8x8xf32>
    %61 = arith.addf %57, %60 : vector<4x8x8xf32>
    %62 = arith.truncf %47 : vector<4x8x8xf32> to vector<4x8x8xbf16>
    %63 = arith.truncf %54 : vector<4x8x8xf32> to vector<4x8x8xbf16>
    "tpu.trace_start"() <{level = 10 : i32, message = "hqe,hke->hqk"}> : () -> ()
    %cst_45 = arith.constant dense<0.000000e+00> : vector<4x8x8xf32>
    %64 = tpu.matmul %62, %63, %cst_45 {dimension_numbers = #tpu.dot_dimension_numbers<[2], [2], [1], [1], [0, 0, 0, 1, 1, 1], [0], [0]>} : vector<4x8x8xbf16>, vector<4x8x8xbf16>, vector<4x8x8xf32> -> vector<4x8x8xf32>
    "tpu.trace_stop"() : () -> ()
    %cst_46 = arith.constant 0.353553385 : f32
    %65 = vector.broadcast %cst_46 : f32 to vector<4x8x8xf32>
    %66 = arith.mulf %64, %65 : vector<4x8x8xf32>
    %67 = vector.shape_cast %10 : vector<1x8xf32> to vector<1x1x8xf32>
    %68 = vector.broadcast %67 : vector<1x1x8xf32> to vector<4x8x8xf32>
    %69 = arith.addf %66, %68 : vector<4x8x8xf32>
    %cst_47 = arith.constant dense<0xFF800000> : vector<4x8xf32>
    %70 = vector.multi_reduction <maximumf>, %69, %cst_47 [2] : vector<4x8x8xf32> to vector<4x8xf32>
    %71 = vector.shape_cast %70 : vector<4x8xf32> to vector<4x8x1xf32>
    %72 = vector.broadcast %71 : vector<4x8x1xf32> to vector<4x8x8xf32>
    %73 = arith.subf %69, %72 : vector<4x8x8xf32>
    %74 = math.exp %73 : vector<4x8x8xf32>
    %cst_48 = arith.constant dense<0.000000e+00> : vector<4x8xf32>
    %75 = vector.multi_reduction <add>, %74, %cst_48 [2] : vector<4x8x8xf32> to vector<4x8xf32>
    %76 = vector.shape_cast %75 : vector<4x8xf32> to vector<4x8x1xf32>
    %77 = tpu.reciprocal %76 {approx = true} : vector<4x8x1xf32> -> vector<4x8x1xf32>
    %78 = vector.broadcast %77 : vector<4x8x1xf32> to vector<4x8x8xf32>
    %79 = arith.mulf %74, %78 : vector<4x8x8xf32>
    %80 = arith.truncf %79 : vector<4x8x8xf32> to vector<4x8x8xbf16>
    %81 = arith.truncf %61 : vector<4x8x8xf32> to vector<4x8x8xbf16>
    "tpu.trace_start"() <{level = 10 : i32, message = "hqk,hke->hqe"}> : () -> ()
    %cst_49 = arith.constant dense<0.000000e+00> : vector<4x8x8xf32>
    %82 = tpu.matmul %80, %81, %cst_49 {dimension_numbers = #tpu.dot_dimension_numbers<[2], [1], [1], [2], [0, 0, 0, 1, 1, 2], [0], [0]>} : vector<4x8x8xbf16>, vector<4x8x8xbf16>, vector<4x8x8xf32> -> vector<4x8x8xf32>
    "tpu.trace_stop"() : () -> ()
    %83 = arith.truncf %82 : vector<4x8x8xf32> to vector<4x8x8xbf16>
    %c0_50 = arith.constant 0 : index
    %c0_51 = arith.constant 0 : index
    %c0_52 = arith.constant 0 : index
    %c0_53 = arith.constant 0 : index
    %84 = vector.load %arg13[%c0_50, %c0_51, %c0_52, %c0_53] : memref<1x4x8x32xbf16, #tpu.memory_space<vmem>>, vector<1x4x8x32xbf16>
    %85 = vector.shape_cast %84 : vector<1x4x8x32xbf16> to vector<4x8x32xbf16>
    "tpu.trace_start"() <{level = 10 : i32, message = "hqe,heo->hqo"}> : () -> ()
    %cst_54 = arith.constant dense<0.000000e+00> : vector<4x8x32xf32>
    %86 = tpu.matmul %83, %85, %cst_54 {dimension_numbers = #tpu.dot_dimension_numbers<[2], [1], [1], [2], [0, 0, 0, 1, 1, 2], [0], [0]>} : vector<4x8x8xbf16>, vector<4x8x32xbf16>, vector<4x8x32xf32> -> vector<4x8x32xf32>
    "tpu.trace_stop"() : () -> ()
    %87 = vector.extract_strided_slice %86 {offsets = [0, 0, 0], sizes = [1, 8, 32], strides = [1, 1, 1]} : vector<4x8x32xf32> to vector<1x8x32xf32>
    %88 = vector.shape_cast %87 : vector<1x8x32xf32> to vector<8x32xf32>
    %89 = vector.extract_strided_slice %86 {offsets = [1, 0, 0], sizes = [1, 8, 32], strides = [1, 1, 1]} : vector<4x8x32xf32> to vector<1x8x32xf32>
    %90 = vector.shape_cast %89 : vector<1x8x32xf32> to vector<8x32xf32>
    %91 = arith.addf %88, %90 : vector<8x32xf32>
    %92 = vector.extract_strided_slice %86 {offsets = [2, 0, 0], sizes = [1, 8, 32], strides = [1, 1, 1]} : vector<4x8x32xf32> to vector<1x8x32xf32>
    %93 = vector.shape_cast %92 : vector<1x8x32xf32> to vector<8x32xf32>
    %94 = arith.addf %91, %93 : vector<8x32xf32>
    %95 = vector.extract_strided_slice %86 {offsets = [3, 0, 0], sizes = [1, 8, 32], strides = [1, 1, 1]} : vector<4x8x32xf32> to vector<1x8x32xf32>
    %96 = vector.shape_cast %95 : vector<1x8x32xf32> to vector<8x32xf32>
    %97 = arith.addf %94, %96 : vector<8x32xf32>
    %c0_55 = arith.constant 0 : index
    %c0_56 = arith.constant 0 : index
    %c0_57 = arith.constant 0 : index
    %98 = vector.load %arg14[%c0_55, %c0_56, %c0_57] : memref<1x1x32xf32, #tpu.memory_space<vmem>>, vector<1x1x32xf32>
    %99 = vector.shape_cast %98 : vector<1x1x32xf32> to vector<1x32xf32>
    %100 = vector.broadcast %99 : vector<1x32xf32> to vector<8x32xf32>
    %101 = arith.addf %97, %100 : vector<8x32xf32>
    %102 = arith.addf %3, %101 : vector<8x32xf32>
    %cst_58 = arith.constant dense<0.000000e+00> : vector<8xf32>
    %103 = vector.multi_reduction <add>, %102, %cst_58 [1] : vector<8x32xf32> to vector<8xf32>
    %104 = vector.shape_cast %103 : vector<8xf32> to vector<8x1xf32>
    %cst_59 = arith.constant 3.200000e+01 : f32
    %105 = vector.broadcast %cst_59 : f32 to vector<8x1xf32>
    %106 = arith.divf %104, %105 : vector<8x1xf32>
    %107 = vector.broadcast %106 : vector<8x1xf32> to vector<8x32xf32>
    %108 = arith.subf %102, %107 : vector<8x32xf32>
    %109 = arith.mulf %108, %108 : vector<8x32xf32>
    %cst_60 = arith.constant dense<0.000000e+00> : vector<8xf32>
    %110 = vector.multi_reduction <add>, %109, %cst_60 [1] : vector<8x32xf32> to vector<8xf32>
    %111 = vector.shape_cast %110 : vector<8xf32> to vector<8x1xf32>
    %cst_61 = arith.constant 3.200000e+01 : f32
    %112 = vector.broadcast %cst_61 : f32 to vector<8x1xf32>
    %113 = arith.divf %111, %112 : vector<8x1xf32>
    %114 = vector.broadcast %106 : vector<8x1xf32> to vector<8x32xf32>
    %115 = arith.subf %102, %114 : vector<8x32xf32>
    %cst_62 = arith.constant 9.99999974E-6 : f32
    %116 = vector.broadcast %cst_62 : f32 to vector<8x1xf32>
    %117 = arith.addf %113, %116 : vector<8x1xf32>
    %118 = math.rsqrt %117 : vector<8x1xf32>
    %119 = vector.broadcast %118 : vector<8x1xf32> to vector<8x32xf32>
    %120 = arith.mulf %115, %119 : vector<8x32xf32>
    %121 = vector.broadcast %12 : vector<1x32xf32> to vector<8x32xf32>
    %122 = arith.mulf %120, %121 : vector<8x32xf32>
    %123 = vector.broadcast %14 : vector<1x32xf32> to vector<8x32xf32>
    %124 = arith.addf %122, %123 : vector<8x32xf32>
    %125 = arith.truncf %124 : vector<8x32xf32> to vector<8x32xbf16>
    %c0_63 = arith.constant 0 : index
    %c0_64 = arith.constant 0 : index
    %c0_65 = arith.constant 0 : index
    %126 = vector.load %arg15[%c0_63, %c0_64, %c0_65] : memref<1x32x64xbf16, #tpu.memory_space<vmem>>, vector<1x32x64xbf16>
    %127 = vector.shape_cast %126 : vector<1x32x64xbf16> to vector<32x64xbf16>
    %cst_66 = arith.constant dense<0.000000e+00> : vector<8x64xf32>
    %128 = tpu.matmul %125, %127, %cst_66 {dimension_numbers = #tpu.dot_dimension_numbers<[1], [0], [0], [1], [0, 0, 1, 1], [], []>} : vector<8x32xbf16>, vector<32x64xbf16>, vector<8x64xf32> -> vector<8x64xf32>
    %c0_67 = arith.constant 0 : index
    %c0_68 = arith.constant 0 : index
    %c0_69 = arith.constant 0 : index
    %129 = vector.load %arg16[%c0_67, %c0_68, %c0_69] : memref<1x1x64xf32, #tpu.memory_space<vmem>>, vector<1x1x64xf32>
    %130 = vector.shape_cast %129 : vector<1x1x64xf32> to vector<1x64xf32>
    %131 = vector.broadcast %130 : vector<1x64xf32> to vector<8x64xf32>
    %132 = arith.addf %128, %131 : vector<8x64xf32>
    %cst_70 = arith.constant 0.000000e+00 : f32
    %133 = vector.broadcast %cst_70 : f32 to vector<8x64xf32>
    %134 = arith.maximumf %132, %133 : vector<8x64xf32>
    %135 = arith.truncf %134 : vector<8x64xf32> to vector<8x64xbf16>
    %c0_71 = arith.constant 0 : index
    %c0_72 = arith.constant 0 : index
    %c0_73 = arith.constant 0 : index
    %136 = vector.load %arg17[%c0_71, %c0_72, %c0_73] : memref<1x64x32xbf16, #tpu.memory_space<vmem>>, vector<1x64x32xbf16>
    %137 = vector.shape_cast %136 : vector<1x64x32xbf16> to vector<64x32xbf16>
    %cst_74 = arith.constant dense<0.000000e+00> : vector<8x32xf32>
    %138 = tpu.matmul %135, %137, %cst_74 {dimension_numbers = #tpu.dot_dimension_numbers<[1], [0], [0], [1], [0, 0, 1, 1], [], []>} : vector<8x64xbf16>, vector<64x32xbf16>, vector<8x32xf32> -> vector<8x32xf32>
    %c0_75 = arith.constant 0 : index
    %c0_76 = arith.constant 0 : index
    %c0_77 = arith.constant 0 : index
    %139 = vector.load %arg18[%c0_75, %c0_76, %c0_77] : memref<1x1x32xf32, #tpu.memory_space<vmem>>, vector<1x1x32xf32>
    %140 = vector.shape_cast %139 : vector<1x1x32xf32> to vector<1x32xf32>
    %141 = vector.broadcast %140 : vector<1x32xf32> to vector<8x32xf32>
    %142 = arith.addf %138, %141 : vector<8x32xf32>
    %143 = arith.addf %102, %142 : vector<8x32xf32>
    %c0_78 = arith.constant 0 : index
    %c0_79 = arith.constant 0 : index
    %144 = vector.load %arg22[%c0_78, %c0_79] : memref<8x32xf32, #tpu.memory_space<vmem>>, vector<8x32xf32>
    tpu.vector_store %arg22[%c0_78, %c0_79], %143 {strides = array<i32>} : memref<8x32xf32, #tpu.memory_space<vmem>>, vector<8x32xf32>,
    %c1_i32 = arith.constant 1 : i32
    %145 = arith.cmpi eq, %arg1, %c1_i32 : i32
    %146 = arith.extui %145 : i1 to i32
    %c0_i32_80 = arith.constant 0 : i32
    %147 = arith.cmpi ne, %146, %c0_i32_80 : i32
    scf.if %147 {
      %c0_81 = arith.constant 0 : index
      %c0_82 = arith.constant 0 : index
      %148 = vector.load %arg19[%c0_81, %c0_82] : memref<1x32xf32, #tpu.memory_space<vmem>>, vector<1x32xf32>
      %c0_83 = arith.constant 0 : index
      %c0_84 = arith.constant 0 : index
      %149 = vector.load %arg20[%c0_83, %c0_84] : memref<1x32xf32, #tpu.memory_space<vmem>>, vector<1x32xf32>
      %cst_85 = arith.constant dense<0.000000e+00> : vector<8xf32>
      %150 = vector.multi_reduction <add>, %143, %cst_85 [1] : vector<8x32xf32> to vector<8xf32>
      %151 = vector.shape_cast %150 : vector<8xf32> to vector<8x1xf32>
      %cst_86 = arith.constant 3.200000e+01 : f32
      %152 = vector.broadcast %cst_86 : f32 to vector<8x1xf32>
      %153 = arith.divf %151, %152 : vector<8x1xf32>
      %154 = vector.broadcast %153 : vector<8x1xf32> to vector<8x32xf32>
      %155 = arith.subf %143, %154 : vector<8x32xf32>
      %156 = arith.mulf %155, %155 : vector<8x32xf32>
      %cst_87 = arith.constant dense<0.000000e+00> : vector<8xf32>
      %157 = vector.multi_reduction <add>, %156, %cst_87 [1] : vector<8x32xf32> to vector<8xf32>
      %158 = vector.shape_cast %157 : vector<8xf32> to vector<8x1xf32>
      %cst_88 = arith.constant 3.200000e+01 : f32
      %159 = vector.broadcast %cst_88 : f32 to vector<8x1xf32>
      %160 = arith.divf %158, %159 : vector<8x1xf32>
      %161 = vector.broadcast %153 : vector<8x1xf32> to vector<8x32xf32>
      %162 = arith.subf %143, %161 : vector<8x32xf32>
      %cst_89 = arith.constant 9.99999974E-6 : f32
      %163 = vector.broadcast %cst_89 : f32 to vector<8x1xf32>
      %164 = arith.addf %160, %163 : vector<8x1xf32>
      %165 = math.rsqrt %164 : vector<8x1xf32>
      %166 = vector.broadcast %165 : vector<8x1xf32> to vector<8x32xf32>
      %167 = arith.mulf %162, %166 : vector<8x32xf32>
      %168 = vector.broadcast %148 : vector<1x32xf32> to vector<8x32xf32>
      %169 = arith.mulf %167, %168 : vector<8x32xf32>
      %170 = vector.broadcast %149 : vector<1x32xf32> to vector<8x32xf32>
      %171 = arith.addf %169, %170 : vector<8x32xf32>
      %c0_90 = arith.constant 0 : index
      %c0_91 = arith.constant 0 : index
      %c0_92 = arith.constant 0 : index
      %172 = vector.load %arg21[%c0_90, %c0_91, %c0_92] : memref<1x8x32xf32, #tpu.memory_space<vmem>>, vector<1x8x32xf32>
      %173 = vector.shape_cast %172 : vector<1x8x32xf32> to vector<8x32xf32>
      %174 = vector.shape_cast %171 : vector<8x32xf32> to vector<1x8x32xf32>
      tpu.vector_store %arg21[%c0_90, %c0_91, %c0_92], %174 {strides = array<i32>} : memref<1x8x32xf32, #tpu.memory_space<vmem>>, vector<1x8x32xf32>,
    } else {
    }
    return
  }
  func.func @transform_0(%arg0: i32, %arg1: i32) -> (i32, i32, i32) {
    %c0_i32 = arith.constant 0 : i32
    %c0_i32_0 = arith.constant 0 : i32
    %c0_i32_1 = arith.constant 0 : i32
    return %arg0, %c0_i32, %c0_i32_0 : i32, i32, i32
  }
  func.func @transform_1(%arg0: i32, %arg1: i32) -> (i32, i32) {
    %c0_i32 = arith.constant 0 : i32
    %c0_i32_0 = arith.constant 0 : i32
    %c0_i32_1 = arith.constant 0 : i32
    return %c0_i32, %c0_i32_0 : i32, i32
  }
  func.func @transform_2(%arg0: i32, %arg1: i32) -> (i32, i32, i32) {
    %c0_i32 = arith.constant 0 : i32
    %c0_i32_0 = arith.constant 0 : i32
    %c0_i32_1 = arith.constant 0 : i32
    return %arg0, %c0_i32, %c0_i32_0 : i32, i32, i32
  }
  func.func @transform_3(%arg0: i32, %arg1: i32) -> (i32, i32, i32) {
    %c0_i32 = arith.constant 0 : i32
    %c0_i32_0 = arith.constant 0 : i32
    %c0_i32_1 = arith.constant 0 : i32
    return %arg1, %c0_i32, %c0_i32_0 : i32, i32, i32
  }
  func.func @transform_4(%arg0: i32, %arg1: i32) -> (i32, i32, i32) {
    %c0_i32 = arith.constant 0 : i32
    %c0_i32_0 = arith.constant 0 : i32
    %c0_i32_1 = arith.constant 0 : i32
    return %arg1, %c0_i32, %c0_i32_0 : i32, i32, i32
  }
  func.func @transform_5(%arg0: i32, %arg1: i32) -> (i32, i32, i32, i32) {
    %c0_i32 = arith.constant 0 : i32
    %c0_i32_0 = arith.constant 0 : i32
    %c0_i32_1 = arith.constant 0 : i32
    %c0_i32_2 = arith.constant 0 : i32
    return %arg1, %c0_i32, %c0_i32_0, %c0_i32_1 : i32, i32, i32, i32
  }
  func.func @transform_6(%arg0: i32, %arg1: i32) -> (i32, i32, i32, i32) {
    %c0_i32 = arith.constant 0 : i32
    %c0_i32_0 = arith.constant 0 : i32
    %c0_i32_1 = arith.constant 0 : i32
    %c0_i32_2 = arith.constant 0 : i32
    return %arg1, %c0_i32, %c0_i32_0, %c0_i32_1 : i32, i32, i32, i32
  }
  func.func @transform_7(%arg0: i32, %arg1: i32) -> (i32, i32, i32, i32) {
    %c0_i32 = arith.constant 0 : i32
    %c0_i32_0 = arith.constant 0 : i32
    %c0_i32_1 = arith.constant 0 : i32
    %c0_i32_2 = arith.constant 0 : i32
    return %arg1, %c0_i32, %c0_i32_0, %c0_i32_1 : i32, i32, i32, i32
  }
  func.func @transform_8(%arg0: i32, %arg1: i32) -> (i32, i32, i32, i32) {
    %c0_i32 = arith.constant 0 : i32
    %c0_i32_0 = arith.constant 0 : i32
    %c0_i32_1 = arith.constant 0 : i32
    %c0_i32_2 = arith.constant 0 : i32
    return %arg1, %c0_i32, %c0_i32_0, %c0_i32_1 : i32, i32, i32, i32
  }
  func.func @transform_9(%arg0: i32, %arg1: i32) -> (i32, i32, i32, i32) {
    %c0_i32 = arith.constant 0 : i32
    %c0_i32_0 = arith.constant 0 : i32
    %c0_i32_1 = arith.constant 0 : i32
    %c0_i32_2 = arith.constant 0 : i32
    return %arg1, %c0_i32, %c0_i32_0, %c0_i32_1 : i32, i32, i32, i32
  }
  func.func @transform_10(%arg0: i32, %arg1: i32) -> (i32, i32, i32, i32) {
    %c0_i32 = arith.constant 0 : i32
    %c0_i32_0 = arith.constant 0 : i32
    %c0_i32_1 = arith.constant 0 : i32
    %c0_i32_2 = arith.constant 0 : i32
    return %arg1, %c0_i32, %c0_i32_0, %c0_i32_1 : i32, i32, i32, i32
  }
  func.func @transform_11(%arg0: i32, %arg1: i32) -> (i32, i32, i32, i32) {
    %c0_i32 = arith.constant 0 : i32
    %c0_i32_0 = arith.constant 0 : i32
    %c0_i32_1 = arith.constant 0 : i32
    %c0_i32_2 = arith.constant 0 : i32
    return %arg1, %c0_i32, %c0_i32_0, %c0_i32_1 : i32, i32, i32, i32
  }
  func.func @transform_12(%arg0: i32, %arg1: i32) -> (i32, i32, i32) {
    %c0_i32 = arith.constant 0 : i32
    %c0_i32_0 = arith.constant 0 : i32
    %c0_i32_1 = arith.constant 0 : i32
    return %arg1, %c0_i32, %c0_i32_0 : i32, i32, i32
  }
  func.func @transform_13(%arg0: i32, %arg1: i32) -> (i32, i32, i32) {
    %c0_i32 = arith.constant 0 : i32
    %c0_i32_0 = arith.constant 0 : i32
    %c0_i32_1 = arith.constant 0 : i32
    return %arg1, %c0_i32, %c0_i32_0 : i32, i32, i32
  }
  func.func @transform_14(%arg0: i32, %arg1: i32) -> (i32, i32, i32) {
    %c0_i32 = arith.constant 0 : i32
    %c0_i32_0 = arith.constant 0 : i32
    %c0_i32_1 = arith.constant 0 : i32
    return %arg1, %c0_i32, %c0_i32_0 : i32, i32, i32
  }
  func.func @transform_15(%arg0: i32, %arg1: i32) -> (i32, i32, i32) {
    %c0_i32 = arith.constant 0 : i32
    %c0_i32_0 = arith.constant 0 : i32
    %c0_i32_1 = arith.constant 0 : i32
    return %arg1, %c0_i32, %c0_i32_0 : i32, i32, i32
  }
  func.func @transform_16(%arg0: i32, %arg1: i32) -> (i32, i32, i32) {
    %c0_i32 = arith.constant 0 : i32
    %c0_i32_0 = arith.constant 0 : i32
    %c0_i32_1 = arith.constant 0 : i32
    return %arg1, %c0_i32, %c0_i32_0 : i32, i32, i32
  }
  func.func @transform_17(%arg0: i32, %arg1: i32) -> (i32, i32) {
    %c0_i32 = arith.constant 0 : i32
    %c0_i32_0 = arith.constant 0 : i32
    %c0_i32_1 = arith.constant 0 : i32
    return %c0_i32, %c0_i32_0 : i32, i32
  }
  func.func @transform_18(%arg0: i32, %arg1: i32) -> (i32, i32) {
    %c0_i32 = arith.constant 0 : i32
    %c0_i32_0 = arith.constant 0 : i32
    %c0_i32_1 = arith.constant 0 : i32
    return %c0_i32, %c0_i32_0 : i32, i32
  }
  func.func @transform_19(%arg0: i32, %arg1: i32) -> (i32, i32, i32) {
    %c0_i32 = arith.constant 0 : i32
    %c0_i32_0 = arith.constant 0 : i32
    %c0_i32_1 = arith.constant 0 : i32
    return %arg0, %c0_i32, %c0_i32_0 : i32, i32, i32
  }
}

</mosaic_0001>

<llo_original>
// kernel: tpu_custom_call.1
$region0: #{tpu_custom_call.1}
  #allocation0 [shape = 'u32[]', space=smem, size = 0x4, offset = 0x4, fixed_abs, tag = 'smem constant byte address 0x4 - core index']
  #allocation1 [shape = 'u32[144,128]{1,0:T(1,128)}', space=vmem, size = 0x12000, scoped, tag = 'internal scratch']
  #allocation2 [shape = 'f32[8,32]{1,0:T(8,128)}', space=vmem, size = 0x1000, scoped, tag = 'scratch operand']
  %s0 = inlined_call_operand.vmem [shape: f32[2,8,32], index: 0, kind: input, shape index: {}]
  %s1 = inlined_call_operand.vmem [shape: f32[8,32], index: 1, kind: input, shape index: {}]
  %s2 = inlined_call_operand.vmem [shape: f32[2,1,8], index: 2, kind: input, shape index: {}]
  %s3 = inlined_call_operand.vmem [shape: f32[2,1,32], index: 3, kind: input, shape index: {}]
  %s4 = inlined_call_operand.vmem [shape: f32[2,1,32], index: 4, kind: input, shape index: {}]
  %s5 = inlined_call_operand.vmem [shape: bf16[2,4,32,8], index: 5, kind: input, shape index: {}]
  %s6 = inlined_call_operand.vmem [shape: f32[2,4,1,8], index: 6, kind: input, shape index: {}]
  %s7 = inlined_call_operand.vmem [shape: bf16[2,4,32,8], index: 7, kind: input, shape index: {}]
  %s8 = inlined_call_operand.vmem [shape: f32[2,4,1,8], index: 8, kind: input, shape index: {}]
  %s9 = inlined_call_operand.vmem [shape: bf16[2,4,32,8], index: 9, kind: input, shape index: {}]
  %s10 = inlined_call_operand.vmem [shape: f32[2,4,1,8], index: 10, kind: input, shape index: {}]
  %s11 = inlined_call_operand.vmem [shape: bf16[2,4,8,32], index: 11, kind: input, shape index: {}]
  %s12 = inlined_call_operand.vmem [shape: f32[2,1,32], index: 12, kind: input, shape index: {}]
  %s13 = inlined_call_operand.vmem [shape: bf16[2,32,64], index: 13, kind: input, shape index: {}]
  %s14 = inlined_call_operand.vmem [shape: f32[2,1,64], index: 14, kind: input, shape index: {}]
  %s15 = inlined_call_operand.vmem [shape: bf16[2,64,32], index: 15, kind: input, shape index: {}]
  %s16 = inlined_call_operand.vmem [shape: f32[2,1,32], index: 16, kind: input, shape index: {}]
  %s17 = inlined_call_operand.vmem [shape: f32[1,32], index: 17, kind: input, shape index: {}]
  %s18 = inlined_call_operand.vmem [shape: f32[1,32], index: 18, kind: input, shape index: {}]
  %s19 = inlined_call_operand.hbm [shape: f32[2,8,32], index: 19, kind: output, shape index: {}]
  %s20 = sld [smem:[#allocation0]]
  $region117: #{tpu_custom_call.1} parent=0
    _
  %s22 = ssub.s32 1, %s20
  %s23 = scalar_select 0, %s22, %s20
  $region1: #{tpu_custom_call.1} parent=0
    #allocation3 [shape = 'u8[8192]{0}', space=vmem, size = 0x2000, scoped, tag = 'output window, operand 0']
    #allocation4 [shape = 's32[2]{0}', space=sflag, size = 0x8, scoped, tag = 'scoped memory for tpu_custom_call.1']
    %24 = vsyncpa [#allocation4], 0
    %s25 = scalar_lea.sflag [#allocation4], 1
    %26 = vsyncpa %s25, 0
    loop: start=0, step=1, limit=6
    $region2: #{tpu_custom_call.1} parent=1 // loop_pre_header
      _
    $region3: #{tpu_custom_call.1} parent=1 // loop_header
      %s28 = sphi 0, %s32
      %p29 = scmp.ge.s32.totalorder %s28, 6
      %s35 = sphi 0, %s47
      %s36 = sphi 0, %s43
      %s37 = sphi 0, %s35
      %s38 = sphi 0, %s36
      %s39 = sphi 0, %s37
      %s40 = sphi 0, %s38
      %s50 = sphi 0, %s52
      %s53 = sphi 0, %s50
      %s54 = sphi 0, %s53
      %s70 = sphi 0, %s54
      %s74 = sphi 0, %s74
      %s76 = sphi 0, %s74
      %s77 = sphi 0, %s76
      %s91 = sphi 0, %s77
      %s97 = sphi 0, %s99
      %s100 = sphi 0, %s97
      %s101 = sphi 0, %s100
      %s117 = sphi 0, %s101
      %s123 = sphi 0, %s125
      %s126 = sphi 0, %s123
      %s127 = sphi 0, %s126
      %s143 = sphi 0, %s127
      %s149 = sphi 0, %s151
      %s152 = sphi 0, %s149
      %s153 = sphi 0, %s152
      %s169 = sphi 0, %s153
      %s175 = sphi 0, %s177
      %s178 = sphi 0, %s175
      %s179 = sphi 0, %s178
      %s195 = sphi 0, %s179
      %s201 = sphi 0, %s203
      %s204 = sphi 0, %s201
      %s205 = sphi 0, %s204
      %s221 = sphi 0, %s205
      %s227 = sphi 0, %s229
      %s230 = sphi 0, %s227
      %s231 = sphi 0, %s230
      %s247 = sphi 0, %s231
      %s253 = sphi 0, %s255
      %s256 = sphi 0, %s253
      %s257 = sphi 0, %s256
      %s273 = sphi 0, %s257
      %s279 = sphi 0, %s281
      %s282 = sphi 0, %s279
      %s283 = sphi 0, %s282
      %s299 = sphi 0, %s283
      %s305 = sphi 0, %s307
      %s308 = sphi 0, %s305
      %s309 = sphi 0, %s308
      %s325 = sphi 0, %s309
      %s331 = sphi 0, %s333
      %s334 = sphi 0, %s331
      %s335 = sphi 0, %s334
      %s351 = sphi 0, %s335
      %s357 = sphi 0, %s359
      %s360 = sphi 0, %s357
      %s361 = sphi 0, %s360
      %s377 = sphi 0, %s361
      %s383 = sphi 0, %s385
      %s386 = sphi 0, %s383
      %s387 = sphi 0, %s386
      %s403 = sphi 0, %s387
      %s409 = sphi 0, %s411
      %s412 = sphi 0, %s409
      %s413 = sphi 0, %s412
      %s429 = sphi 0, %s413
      %s435 = sphi 0, %s437
      %s438 = sphi 0, %s435
      %s439 = sphi 0, %s438
      %s455 = sphi 0, %s439
      %s461 = sphi 0, %s463
      %s464 = sphi 0, %s461
      %s465 = sphi 0, %s464
      %s481 = sphi 0, %s465
      %s485 = sphi 0, %s485
      %s487 = sphi 0, %s485
      %s488 = sphi 0, %s487
      %s502 = sphi 0, %s488
      %s506 = sphi 0, %s506
      %s508 = sphi 0, %s506
      %s509 = sphi 0, %s508
      %s523 = sphi 0, %s509
      %s529 = sphi 0, %s531
      %s532 = sphi 0, %s529
      %s533 = sphi 0, %s532
      %s549 = sphi 0, %s533
    $region4: #{tpu_custom_call.1} parent=1 // loop_header_branch
      %31 = sbr.rel (%p29) target = $region8
    $region5: #{tpu_custom_call.1} parent=1 // loop_body
      %s33 = ssub.s32 %s28, 1
      %s34 = ssub.s32 %s28, 2
      %s41 = sadd.s32 1, %s36
      %p42 = scmp.ge.s32.totalorder %s41, 2
      %s43 = scalar_select %p42, 0, %s41
      %s44 = sadd.s32 1, %s35
      %s45 = scalar_select %p42, %s44, %s35
      %p46 = scmp.ge.s32.totalorder %s45, 2
      %s47 = scalar_select %p46, 0, %s45
      %s48 = ssub.s32 %s35, %s47
      %p49 = scmp.eq.s32.totalorder %s48, 0
      %s51 = sadd.s32 %s50, 1
      %s52 = scalar_select %p49, %s50, %s51
      %p55 = pneg %p49
      %p56 = scmp.eq.s32.totalorder %s28, 3
      %p57 = por %p55, %p56
      %p58 = scmp.ne.s32.totalorder %s50, %s53
      %p59 = scmp.eq.s32.totalorder %s28, 0
      %p60 = por %p58, %p59
      %p61 = scmp.ne.s32.totalorder %s50, %s53
      %p62 = scmp.eq.s32.totalorder %s33, 3
      %p63 = por %p61, %p62
      %p64 = scmp.ne.s32.totalorder %s53, %s54
      %p65 = scmp.eq.s32.totalorder %s33, 0
      %p66 = por %p64, %p65
      %p67 = scmp.ne.s32.totalorder %s53, %s54
      %p68 = scmp.eq.s32.totalorder %s34, 3
      %p69 = por %p67, %p68
      %p71 = scmp.ne.s32.totalorder %s54, %s70
      %p72 = scmp.eq.s32.totalorder %s34, 0
      %p73 = por %p71, %p72
      %s75 = sadd.s32 %s74, 1
      %p78 = scmp.eq.s32.totalorder %s28, 3
      %p79 = scmp.ne.s32.totalorder %s74, %s76
      %p80 = scmp.eq.s32.totalorder %s28, 0
      %p81 = por %p79, %p80
      %p82 = scmp.ne.s32.totalorder %s74, %s76
      %p83 = scmp.eq.s32.totalorder %s33, 3
      %p84 = por %p82, %p83
      %p85 = scmp.ne.s32.totalorder %s76, %s77
      %p86 = scmp.eq.s32.totalorder %s33, 0
      %p87 = por %p85, %p86
      %p88 = scmp.ne.s32.totalorder %s76, %s77
      %p89 = scmp.eq.s32.totalorder %s34, 3
      %p90 = por %p88, %p89
      %p92 = scmp.ne.s32.totalorder %s77, %s91
      %p93 = scmp.eq.s32.totalorder %s34, 0
      %p94 = por %p92, %p93
      %s95 = ssub.s32 %s35, %s47
      %p96 = scmp.eq.s32.totalorder %s95, 0
      %s98 = sadd.s32 %s97, 1
      %s99 = scalar_select %p96, %s97, %s98
      %p102 = pneg %p96
      %p103 = scmp.eq.s32.totalorder %s28, 3
      %p104 = por %p102, %p103
      %p105 = scmp.ne.s32.totalorder %s97, %s100
      %p106 = scmp.eq.s32.totalorder %s28, 0
      %p107 = por %p105, %p106
      %p108 = scmp.ne.s32.totalorder %s97, %s100
      %p109 = scmp.eq.s32.totalorder %s33, 3
      %p110 = por %p108, %p109
      %p111 = scmp.ne.s32.totalorder %s100, %s101
      %p112 = scmp.eq.s32.totalorder %s33, 0
      %p113 = por %p111, %p112
      %p114 = scmp.ne.s32.totalorder %s100, %s101
      %p115 = scmp.eq.s32.totalorder %s34, 3
      %p116 = por %p114, %p115
      %p118 = scmp.ne.s32.totalorder %s101, %s117
      %p119 = scmp.eq.s32.totalorder %s34, 0
      %p120 = por %p118, %p119
      %s121 = ssub.s32 %s36, %s43
      %p122 = scmp.eq.s32.totalorder %s121, 0
      %s124 = sadd.s32 %s123, 1
      %s125 = scalar_select %p122, %s123, %s124
      %p128 = pneg %p122
      %p129 = scmp.eq.s32.totalorder %s28, 3
      %p130 = por %p128, %p129
      %p131 = scmp.ne.s32.totalorder %s123, %s126
      %p132 = scmp.eq.s32.totalorder %s28, 0
      %p133 = por %p131, %p132
      %p134 = scmp.ne.s32.totalorder %s123, %s126
      %p135 = scmp.eq.s32.totalorder %s33, 3
      %p136 = por %p134, %p135
      %p137 = scmp.ne.s32.totalorder %s126, %s127
      %p138 = scmp.eq.s32.totalorder %s33, 0
      %p139 = por %p137, %p138
      %p140 = scmp.ne.s32.totalorder %s126, %s127
      %p141 = scmp.eq.s32.totalorder %s34, 3
      %p142 = por %p140, %p141
      %p144 = scmp.ne.s32.totalorder %s127, %s143
      %p145 = scmp.eq.s32.totalorder %s34, 0
      %p146 = por %p144, %p145
      %s147 = ssub.s32 %s36, %s43
      %p148 = scmp.eq.s32.totalorder %s147, 0
      %s150 = sadd.s32 %s149, 1
      %s151 = scalar_select %p148, %s149, %s150
      %p154 = pneg %p148
      %p155 = scmp.eq.s32.totalorder %s28, 3
      %p156 = por %p154, %p155
      %p157 = scmp.ne.s32.totalorder %s149, %s152
      %p158 = scmp.eq.s32.totalorder %s28, 0
      %p159 = por %p157, %p158
      %p160 = scmp.ne.s32.totalorder %s149, %s152
      %p161 = scmp.eq.s32.totalorder %s33, 3
      %p162 = por %p160, %p161
      %p163 = scmp.ne.s32.totalorder %s152, %s153
      %p164 = scmp.eq.s32.totalorder %s33, 0
      %p165 = por %p163, %p164
      %p166 = scmp.ne.s32.totalorder %s152, %s153
      %p167 = scmp.eq.s32.totalorder %s34, 3
      %p168 = por %p166, %p167
      %p170 = scmp.ne.s32.totalorder %s153, %s169
      %p171 = scmp.eq.s32.totalorder %s34, 0
      %p172 = por %p170, %p171
      %s173 = ssub.s32 %s36, %s43
      %p174 = scmp.eq.s32.totalorder %s173, 0
      %s176 = sadd.s32 %s175, 1
      %s177 = scalar_select %p174, %s175, %s176
      %p180 = pneg %p174
      %p181 = scmp.eq.s32.totalorder %s28, 3
      %p182 = por %p180, %p181
      %p183 = scmp.ne.s32.totalorder %s175, %s178
      %p184 = scmp.eq.s32.totalorder %s28, 0
      %p185 = por %p183, %p184
      %p186 = scmp.ne.s32.totalorder %s175, %s178
      %p187 = scmp.eq.s32.totalorder %s33, 3
      %p188 = por %p186, %p187
      %p189 = scmp.ne.s32.totalorder %s178, %s179
      %p190 = scmp.eq.s32.totalorder %s33, 0
      %p191 = por %p189, %p190
      %p192 = scmp.ne.s32.totalorder %s178, %s179
      %p193 = scmp.eq.s32.totalorder %s34, 3
      %p194 = por %p192, %p193
      %p196 = scmp.ne.s32.totalorder %s179, %s195
      %p197 = scmp.eq.s32.totalorder %s34, 0
      %p198 = por %p196, %p197
      %s199 = ssub.s32 %s36, %s43
      %p200 = scmp.eq.s32.totalorder %s199, 0
      %s202 = sadd.s32 %s201, 1
      %s203 = scalar_select %p200, %s201, %s202
      %p206 = pneg %p200
      %p207 = scmp.eq.s32.totalorder %s28, 3
      %p208 = por %p206, %p207
      %p209 = scmp.ne.s32.totalorder %s201, %s204
      %p210 = scmp.eq.s32.totalorder %s28, 0
      %p211 = por %p209, %p210
      %p212 = scmp.ne.s32.totalorder %s201, %s204
      %p213 = scmp.eq.s32.totalorder %s33, 3
      %p214 = por %p212, %p213
      %p215 = scmp.ne.s32.totalorder %s204, %s205
      %p216 = scmp.eq.s32.totalorder %s33, 0
      %p217 = por %p215, %p216
      %p218 = scmp.ne.s32.totalorder %s204, %s205
      %p219 = scmp.eq.s32.totalorder %s34, 3
      %p220 = por %p218, %p219
      %p222 = scmp.ne.s32.totalorder %s205, %s221
      %p223 = scmp.eq.s32.totalorder %s34, 0
      %p224 = por %p222, %p223
      %s225 = ssub.s32 %s36, %s43
      %p226 = scmp.eq.s32.totalorder %s225, 0
      %s228 = sadd.s32 %s227, 1
      %s229 = scalar_select %p226, %s227, %s228
      %p232 = pneg %p226
      %p233 = scmp.eq.s32.totalorder %s28, 3
      %p234 = por %p232, %p233
      %p235 = scmp.ne.s32.totalorder %s227, %s230
      %p236 = scmp.eq.s32.totalorder %s28, 0
      %p237 = por %p235, %p236
      %p238 = scmp.ne.s32.totalorder %s227, %s230
      %p239 = scmp.eq.s32.totalorder %s33, 3
      %p240 = por %p238, %p239
      %p241 = scmp.ne.s32.totalorder %s230, %s231
      %p242 = scmp.eq.s32.totalorder %s33, 0
      %p243 = por %p241, %p242
      %p244 = scmp.ne.s32.totalorder %s230, %s231
      %p245 = scmp.eq.s32.totalorder %s34, 3
      %p246 = por %p244, %p245
      %p248 = scmp.ne.s32.totalorder %s231, %s247
      %p249 = scmp.eq.s32.totalorder %s34, 0
      %p250 = por %p248, %p249
      %s251 = ssub.s32 %s36, %s43
      %p252 = scmp.eq.s32.totalorder %s251, 0
      %s254 = sadd.s32 %s253, 1
      %s255 = scalar_select %p252, %s253, %s254
      %p258 = pneg %p252
      %p259 = scmp.eq.s32.totalorder %s28, 3
      %p260 = por %p258, %p259
      %p261 = scmp.ne.s32.totalorder %s253, %s256
      %p262 = scmp.eq.s32.totalorder %s28, 0
      %p263 = por %p261, %p262
      %p264 = scmp.ne.s32.totalorder %s253, %s256
      %p265 = scmp.eq.s32.totalorder %s33, 3
      %p266 = por %p264, %p265
      %p267 = scmp.ne.s32.totalorder %s256, %s257
      %p268 = scmp.eq.s32.totalorder %s33, 0
      %p269 = por %p267, %p268
      %p270 = scmp.ne.s32.totalorder %s256, %s257
      %p271 = scmp.eq.s32.totalorder %s34, 3
      %p272 = por %p270, %p271
      %p274 = scmp.ne.s32.totalorder %s257, %s273
      %p275 = scmp.eq.s32.totalorder %s34, 0
      %p276 = por %p274, %p275
      %s277 = ssub.s32 %s36, %s43
      %p278 = scmp.eq.s32.totalorder %s277, 0
      %s280 = sadd.s32 %s279, 1
      %s281 = scalar_select %p278, %s279, %s280
      %p284 = pneg %p278
      %p285 = scmp.eq.s32.totalorder %s28, 3
      %p286 = por %p284, %p285
      %p287 = scmp.ne.s32.totalorder %s279, %s282
      %p288 = scmp.eq.s32.totalorder %s28, 0
      %p289 = por %p287, %p288
      %p290 = scmp.ne.s32.totalorder %s279, %s282
      %p291 = scmp.eq.s32.totalorder %s33, 3
      %p292 = por %p290, %p291
      %p293 = scmp.ne.s32.totalorder %s282, %s283
      %p294 = scmp.eq.s32.totalorder %s33, 0
      %p295 = por %p293, %p294
      %p296 = scmp.ne.s32.totalorder %s282, %s283
      %p297 = scmp.eq.s32.totalorder %s34, 3
      %p298 = por %p296, %p297
      %p300 = scmp.ne.s32.totalorder %s283, %s299
      %p301 = scmp.eq.s32.totalorder %s34, 0
      %p302 = por %p300, %p301
      %s303 = ssub.s32 %s36, %s43
      %p304 = scmp.eq.s32.totalorder %s303, 0
      %s306 = sadd.s32 %s305, 1
      %s307 = scalar_select %p304, %s305, %s306
      %p310 = pneg %p304
      %p311 = scmp.eq.s32.totalorder %s28, 3
      %p312 = por %p310, %p311
      %p313 = scmp.ne.s32.totalorder %s305, %s308
      %p314 = scmp.eq.s32.totalorder %s28, 0
      %p315 = por %p313, %p314
      %p316 = scmp.ne.s32.totalorder %s305, %s308
      %p317 = scmp.eq.s32.totalorder %s33, 3
      %p318 = por %p316, %p317
      %p319 = scmp.ne.s32.totalorder %s308, %s309
      %p320 = scmp.eq.s32.totalorder %s33, 0
      %p321 = por %p319, %p320
      %p322 = scmp.ne.s32.totalorder %s308, %s309
      %p323 = scmp.eq.s32.totalorder %s34, 3
      %p324 = por %p322, %p323
      %p326 = scmp.ne.s32.totalorder %s309, %s325
      %p327 = scmp.eq.s32.totalorder %s34, 0
      %p328 = por %p326, %p327
      %s329 = ssub.s32 %s36, %s43
      %p330 = scmp.eq.s32.totalorder %s329, 0
      %s332 = sadd.s32 %s331, 1
      %s333 = scalar_select %p330, %s331, %s332
      %p336 = pneg %p330
      %p337 = scmp.eq.s32.totalorder %s28, 3
      %p338 = por %p336, %p337
      %p339 = scmp.ne.s32.totalorder %s331, %s334
      %p340 = scmp.eq.s32.totalorder %s28, 0
      %p341 = por %p339, %p340
      %p342 = scmp.ne.s32.totalorder %s331, %s334
      %p343 = scmp.eq.s32.totalorder %s33, 3
      %p344 = por %p342, %p343
      %p345 = scmp.ne.s32.totalorder %s334, %s335
      %p346 = scmp.eq.s32.totalorder %s33, 0
      %p347 = por %p345, %p346
      %p348 = scmp.ne.s32.totalorder %s334, %s335
      %p349 = scmp.eq.s32.totalorder %s34, 3
      %p350 = por %p348, %p349
      %p352 = scmp.ne.s32.totalorder %s335, %s351
      %p353 = scmp.eq.s32.totalorder %s34, 0
      %p354 = por %p352, %p353
      %s355 = ssub.s32 %s36, %s43
      %p356 = scmp.eq.s32.totalorder %s355, 0
      %s358 = sadd.s32 %s357, 1
      %s359 = scalar_select %p356, %s357, %s358
      %p362 = pneg %p356
      %p363 = scmp.eq.s32.totalorder %s28, 3
      %p364 = por %p362, %p363
      %p365 = scmp.ne.s32.totalorder %s357, %s360
      %p366 = scmp.eq.s32.totalorder %s28, 0
      %p367 = por %p365, %p366
      %p368 = scmp.ne.s32.totalorder %s357, %s360
      %p369 = scmp.eq.s32.totalorder %s33, 3
      %p370 = por %p368, %p369
      %p371 = scmp.ne.s32.totalorder %s360, %s361
      %p372 = scmp.eq.s32.totalorder %s33, 0
      %p373 = por %p371, %p372
      %p374 = scmp.ne.s32.totalorder %s360, %s361
      %p375 = scmp.eq.s32.totalorder %s34, 3
      %p376 = por %p374, %p375
      %p378 = scmp.ne.s32.totalorder %s361, %s377
      %p379 = scmp.eq.s32.totalorder %s34, 0
      %p380 = por %p378, %p379
      %s381 = ssub.s32 %s36, %s43
      %p382 = scmp.eq.s32.totalorder %s381, 0
      %s384 = sadd.s32 %s383, 1
      %s385 = scalar_select %p382, %s383, %s384
      %p388 = pneg %p382
      %p389 = scmp.eq.s32.totalorder %s28, 3
      %p390 = por %p388, %p389
      %p391 = scmp.ne.s32.totalorder %s383, %s386
      %p392 = scmp.eq.s32.totalorder %s28, 0
      %p393 = por %p391, %p392
      %p394 = scmp.ne.s32.totalorder %s383, %s386
      %p395 = scmp.eq.s32.totalorder %s33, 3
      %p396 = por %p394, %p395
      %p397 = scmp.ne.s32.totalorder %s386, %s387
      %p398 = scmp.eq.s32.totalorder %s33, 0
      %p399 = por %p397, %p398
      %p400 = scmp.ne.s32.totalorder %s386, %s387
      %p401 = scmp.eq.s32.totalorder %s34, 3
      %p402 = por %p400, %p401
      %p404 = scmp.ne.s32.totalorder %s387, %s403
      %p405 = scmp.eq.s32.totalorder %s34, 0
      %p406 = por %p404, %p405
      %s407 = ssub.s32 %s36, %s43
      %p408 = scmp.eq.s32.totalorder %s407, 0
      %s410 = sadd.s32 %s409, 1
      %s411 = scalar_select %p408, %s409, %s410
      %p414 = pneg %p408
      %p415 = scmp.eq.s32.totalorder %s28, 3
      %p416 = por %p414, %p415
      %p417 = scmp.ne.s32.totalorder %s409, %s412
      %p418 = scmp.eq.s32.totalorder %s28, 0
      %p419 = por %p417, %p418
      %p420 = scmp.ne.s32.totalorder %s409, %s412
      %p421 = scmp.eq.s32.totalorder %s33, 3
      %p422 = por %p420, %p421
      %p423 = scmp.ne.s32.totalorder %s412, %s413
      %p424 = scmp.eq.s32.totalorder %s33, 0
      %p425 = por %p423, %p424
      %p426 = scmp.ne.s32.totalorder %s412, %s413
      %p427 = scmp.eq.s32.totalorder %s34, 3
      %p428 = por %p426, %p427
      %p430 = scmp.ne.s32.totalorder %s413, %s429
      %p431 = scmp.eq.s32.totalorder %s34, 0
      %p432 = por %p430, %p431
      %s433 = ssub.s32 %s36, %s43
      %p434 = scmp.eq.s32.totalorder %s433, 0
      %s436 = sadd.s32 %s435, 1
      %s437 = scalar_select %p434, %s435, %s436
      %p440 = pneg %p434
      %p441 = scmp.eq.s32.totalorder %s28, 3
      %p442 = por %p440, %p441
      %p443 = scmp.ne.s32.totalorder %s435, %s438
      %p444 = scmp.eq.s32.totalorder %s28, 0
      %p445 = por %p443, %p444
      %p446 = scmp.ne.s32.totalorder %s435, %s438
      %p447 = scmp.eq.s32.totalorder %s33, 3
      %p448 = por %p446, %p447
      %p449 = scmp.ne.s32.totalorder %s438, %s439
      %p450 = scmp.eq.s32.totalorder %s33, 0
      %p451 = por %p449, %p450
      %p452 = scmp.ne.s32.totalorder %s438, %s439
      %p453 = scmp.eq.s32.totalorder %s34, 3
      %p454 = por %p452, %p453
      %p456 = scmp.ne.s32.totalorder %s439, %s455
      %p457 = scmp.eq.s32.totalorder %s34, 0
      %p458 = por %p456, %p457
      %s459 = ssub.s32 %s36, %s43
      %p460 = scmp.eq.s32.totalorder %s459, 0
      %s462 = sadd.s32 %s461, 1
      %s463 = scalar_select %p460, %s461, %s462
      %p466 = pneg %p460
      %p467 = scmp.eq.s32.totalorder %s28, 3
      %p468 = por %p466, %p467
      %p469 = scmp.ne.s32.totalorder %s461, %s464
      %p470 = scmp.eq.s32.totalorder %s28, 0
      %p471 = por %p469, %p470
      %p472 = scmp.ne.s32.totalorder %s461, %s464
      %p473 = scmp.eq.s32.totalorder %s33, 3
      %p474 = por %p472, %p473
      %p475 = scmp.ne.s32.totalorder %s464, %s465
      %p476 = scmp.eq.s32.totalorder %s33, 0
      %p477 = por %p475, %p476
      %p478 = scmp.ne.s32.totalorder %s464, %s465
      %p479 = scmp.eq.s32.totalorder %s34, 3
      %p480 = por %p478, %p479
      %p482 = scmp.ne.s32.totalorder %s465, %s481
      %p483 = scmp.eq.s32.totalorder %s34, 0
      %p484 = por %p482, %p483
      %s486 = sadd.s32 %s485, 1
      %p489 = scmp.eq.s32.totalorder %s28, 3
      %p490 = scmp.ne.s32.totalorder %s485, %s487
      %p491 = scmp.eq.s32.totalorder %s28, 0
      %p492 = por %p490, %p491
      %p493 = scmp.ne.s32.totalorder %s485, %s487
      %p494 = scmp.eq.s32.totalorder %s33, 3
      %p495 = por %p493, %p494
      %p496 = scmp.ne.s32.totalorder %s487, %s488
      %p497 = scmp.eq.s32.totalorder %s33, 0
      %p498 = por %p496, %p497
      %p499 = scmp.ne.s32.totalorder %s487, %s488
      %p500 = scmp.eq.s32.totalorder %s34, 3
      %p501 = por %p499, %p500
      %p503 = scmp.ne.s32.totalorder %s488, %s502
      %p504 = scmp.eq.s32.totalorder %s34, 0
      %p505 = por %p503, %p504
      %s507 = sadd.s32 %s506, 1
      %p510 = scmp.eq.s32.totalorder %s28, 3
      %p511 = scmp.ne.s32.totalorder %s506, %s508
      %p512 = scmp.eq.s32.totalorder %s28, 0
      %p513 = por %p511, %p512
      %p514 = scmp.ne.s32.totalorder %s506, %s508
      %p515 = scmp.eq.s32.totalorder %s33, 3
      %p516 = por %p514, %p515
      %p517 = scmp.ne.s32.totalorder %s508, %s509
      %p518 = scmp.eq.s32.totalorder %s33, 0
      %p519 = por %p517, %p518
      %p520 = scmp.ne.s32.totalorder %s508, %s509
      %p521 = scmp.eq.s32.totalorder %s34, 3
      %p522 = por %p520, %p521
      %p524 = scmp.ne.s32.totalorder %s509, %s523
      %p525 = scmp.eq.s32.totalorder %s34, 0
      %p526 = por %p524, %p525
      %s527 = ssub.s32 %s35, %s47
      %p528 = scmp.eq.s32.totalorder %s527, 0
      %s530 = sadd.s32 %s529, 1
      %s531 = scalar_select %p528, %s529, %s530
      %p534 = pneg %p528
      %p535 = scmp.eq.s32.totalorder %s28, 3
      %p536 = por %p534, %p535
      %p537 = scmp.ne.s32.totalorder %s529, %s532
      %p538 = scmp.eq.s32.totalorder %s28, 0
      %p539 = por %p537, %p538
      %p540 = scmp.ne.s32.totalorder %s529, %s532
      %p541 = scmp.eq.s32.totalorder %s33, 3
      %p542 = por %p540, %p541
      %p543 = scmp.ne.s32.totalorder %s532, %s533
      %p544 = scmp.eq.s32.totalorder %s33, 0
      %p545 = por %p543, %p544
      %p546 = scmp.ne.s32.totalorder %s532, %s533
      %p547 = scmp.eq.s32.totalorder %s34, 3
      %p548 = por %p546, %p547
      %p550 = scmp.ne.s32.totalorder %s533, %s549
      %p551 = scmp.eq.s32.totalorder %s34, 0
      %p552 = por %p550, %p551
      %p553 = scmp.le.s32.totalorder 1, %s28
      %p554 = scmp.lt.s32.totalorder %s28, 5
      %p555 = pnand %p553, %p554
      %p556 = pneg %p555
      // Predicated region
      $region9: #{tpu_custom_call.1} parent=5 // pred_check
        _
      $region10: #{tpu_custom_call.1} parent=5 // pred_check_branch
        %558 = sbr.rel (%p555) target = $region12
      $region11: #{tpu_custom_call.1} parent=5 // pred_region
        %s559 = ssub.s32 %s28, 1
        // Predicated region
        $region13: #{tpu_custom_call.1} parent=11 // pred_check
          %p560 = pneg %p87
        $region14: #{tpu_custom_call.1} parent=11 // pred_check_branch
          %562 = sbr.rel (%p560) target = $region16
        $region15: #{tpu_custom_call.1} parent=11 // pred_region
          _
        $region16: #{tpu_custom_call.1} parent=11 // pred_fallthru
          _
        // Predicated region
        $region17: #{tpu_custom_call.1} parent=11 // pred_check
          %p563 = pneg %p498
        $region18: #{tpu_custom_call.1} parent=11 // pred_check_branch
          %565 = sbr.rel (%p563) target = $region20
        $region19: #{tpu_custom_call.1} parent=11 // pred_region
          _
        $region20: #{tpu_custom_call.1} parent=11 // pred_fallthru
          _
        // Predicated region
        $region21: #{tpu_custom_call.1} parent=11 // pred_check
          %p566 = pneg %p519
        $region22: #{tpu_custom_call.1} parent=11 // pred_check_branch
          %568 = sbr.rel (%p566) target = $region24
        $region23: #{tpu_custom_call.1} parent=11 // pred_region
          _
        $region24: #{tpu_custom_call.1} parent=11 // pred_fallthru
          _
      $region12: #{tpu_custom_call.1} parent=5 // pred_fallthru
        _
      %p569 = scmp.lt.s32.totalorder %s28, 4
      // Predicated region
      $region25: #{tpu_custom_call.1} parent=5 // pred_check
        %p570 = pneg %p569
      $region26: #{tpu_custom_call.1} parent=5 // pred_check_branch
        %572 = sbr.rel (%p570) target = $region28
      $region27: #{tpu_custom_call.1} parent=5 // pred_region
        // Predicated region
        $region29: #{tpu_custom_call.1} parent=27 // pred_check
          %p573 = pneg %p60
        $region30: #{tpu_custom_call.1} parent=27 // pred_check_branch
          %575 = sbr.rel (%p573) target = $region32
        $region31: #{tpu_custom_call.1} parent=27 // pred_region
          %p576 = scmp.lt.s32.totalorder %s35, 1
          %s577 = scalar_select %p576, %s35, 1
          %s578 = smul.addr %s577, 8
          %s579 = scalar_lea.vmem %s0, %s578
        $region32: #{tpu_custom_call.1} parent=27 // pred_fallthru
          _
        // Predicated region
        $region33: #{tpu_custom_call.1} parent=27 // pred_check
          %p580 = pneg %p107
        $region34: #{tpu_custom_call.1} parent=27 // pred_check_branch
          %582 = sbr.rel (%p580) target = $region36
        $region35: #{tpu_custom_call.1} parent=27 // pred_region
          %p583 = scmp.lt.s32.totalorder %s35, 1
          %s584 = scalar_select %p583, %s35, 1
          %s585 = scalar_lea.vmem %s2, %s584
        $region36: #{tpu_custom_call.1} parent=27 // pred_fallthru
          _
        // Predicated region
        $region37: #{tpu_custom_call.1} parent=27 // pred_check
          %p586 = pneg %p133
        $region38: #{tpu_custom_call.1} parent=27 // pred_check_branch
          %588 = sbr.rel (%p586) target = $region40
        $region39: #{tpu_custom_call.1} parent=27 // pred_region
          %p589 = scmp.lt.s32.totalorder %s36, 1
          %s590 = scalar_select %p589, %s36, 1
          %s591 = scalar_lea.vmem %s3, %s590
        $region40: #{tpu_custom_call.1} parent=27 // pred_fallthru
          _
        // Predicated region
        $region41: #{tpu_custom_call.1} parent=27 // pred_check
          %p592 = pneg %p159
        $region42: #{tpu_custom_call.1} parent=27 // pred_check_branch
          %594 = sbr.rel (%p592) target = $region44
        $region43: #{tpu_custom_call.1} parent=27 // pred_region
          %p595 = scmp.lt.s32.totalorder %s36, 1
          %s596 = scalar_select %p595, %s36, 1
          %s597 = scalar_lea.vmem %s4, %s596
        $region44: #{tpu_custom_call.1} parent=27 // pred_fallthru
          _
        // Predicated region
        $region45: #{tpu_custom_call.1} parent=27 // pred_check
          %p598 = pneg %p185
        $region46: #{tpu_custom_call.1} parent=27 // pred_check_branch
          %600 = sbr.rel (%p598) target = $region48
        $region47: #{tpu_custom_call.1} parent=27 // pred_region
          %p601 = scmp.lt.s32.totalorder %s36, 1
          %s602 = scalar_select %p601, %s36, 1
          %s603 = smul.addr %s602, 16
          %s604 = smul.addr %s603, 4
          %s605 = scalar_lea.vmem %s5, %s604
        $region48: #{tpu_custom_call.1} parent=27 // pred_fallthru
          _
        // Predicated region
        $region49: #{tpu_custom_call.1} parent=27 // pred_check
          %p606 = pneg %p211
        $region50: #{tpu_custom_call.1} parent=27 // pred_check_branch
          %608 = sbr.rel (%p606) target = $region52
        $region51: #{tpu_custom_call.1} parent=27 // pred_region
          %p609 = scmp.lt.s32.totalorder %s36, 1
          %s610 = scalar_select %p609, %s36, 1
          %s611 = smul.addr %s610, 4
          %s612 = scalar_lea.vmem %s6, %s611
        $region52: #{tpu_custom_call.1} parent=27 // pred_fallthru
          _
        // Predicated region
        $region53: #{tpu_custom_call.1} parent=27 // pred_check
          %p613 = pneg %p237
        $region54: #{tpu_custom_call.1} parent=27 // pred_check_branch
          %615 = sbr.rel (%p613) target = $region56
        $region55: #{tpu_custom_call.1} parent=27 // pred_region
          %p616 = scmp.lt.s32.totalorder %s36, 1
          %s617 = scalar_select %p616, %s36, 1
          %s618 = smul.addr %s617, 16
          %s619 = smul.addr %s618, 4
          %s620 = scalar_lea.vmem %s7, %s619
        $region56: #{tpu_custom_call.1} parent=27 // pred_fallthru
          _
        // Predicated region
        $region57: #{tpu_custom_call.1} parent=27 // pred_check
          %p621 = pneg %p263
        $region58: #{tpu_custom_call.1} parent=27 // pred_check_branch
          %623 = sbr.rel (%p621) target = $region60
        $region59: #{tpu_custom_call.1} parent=27 // pred_region
          %p624 = scmp.lt.s32.totalorder %s36, 1
          %s625 = scalar_select %p624, %s36, 1
          %s626 = smul.addr %s625, 4
          %s627 = scalar_lea.vmem %s8, %s626
        $region60: #{tpu_custom_call.1} parent=27 // pred_fallthru
          _
        // Predicated region
        $region61: #{tpu_custom_call.1} parent=27 // pred_check
          %p628 = pneg %p289
        $region62: #{tpu_custom_call.1} parent=27 // pred_check_branch
          %630 = sbr.rel (%p628) target = $region64
        $region63: #{tpu_custom_call.1} parent=27 // pred_region
          %p631 = scmp.lt.s32.totalorder %s36, 1
          %s632 = scalar_select %p631, %s36, 1
          %s633 = smul.addr %s632, 16
          %s634 = smul.addr %s633, 4
          %s635 = scalar_lea.vmem %s9, %s634
        $region64: #{tpu_custom_call.1} parent=27 // pred_fallthru
          _
        // Predicated region
        $region65: #{tpu_custom_call.1} parent=27 // pred_check
          %p636 = pneg %p315
        $region66: #{tpu_custom_call.1} parent=27 // pred_check_branch
          %638 = sbr.rel (%p636) target = $region68
        $region67: #{tpu_custom_call.1} parent=27 // pred_region
          %p639 = scmp.lt.s32.totalorder %s36, 1
          %s640 = scalar_select %p639, %s36, 1
          %s641 = smul.addr %s640, 4
          %s642 = scalar_lea.vmem %s10, %s641
        $region68: #{tpu_custom_call.1} parent=27 // pred_fallthru
          _
        // Predicated region
        $region69: #{tpu_custom_call.1} parent=27 // pred_check
          %p643 = pneg %p341
        $region70: #{tpu_custom_call.1} parent=27 // pred_check_branch
          %645 = sbr.rel (%p643) target = $region72
        $region71: #{tpu_custom_call.1} parent=27 // pred_region
          %p646 = scmp.lt.s32.totalorder %s36, 1
          %s647 = scalar_select %p646, %s36, 1
          %s648 = smul.addr %s647, 4
          %s649 = smul.addr %s648, 4
          %s650 = scalar_lea.vmem %s11, %s649
        $region72: #{tpu_custom_call.1} parent=27 // pred_fallthru
          _
        // Predicated region
        $region73: #{tpu_custom_call.1} parent=27 // pred_check
          %p651 = pneg %p367
        $region74: #{tpu_custom_call.1} parent=27 // pred_check_branch
          %653 = sbr.rel (%p651) target = $region76
        $region75: #{tpu_custom_call.1} parent=27 // pred_region
          %p654 = scmp.lt.s32.totalorder %s36, 1
          %s655 = scalar_select %p654, %s36, 1
          %s656 = scalar_lea.vmem %s12, %s655
        $region76: #{tpu_custom_call.1} parent=27 // pred_fallthru
          _
        // Predicated region
        $region77: #{tpu_custom_call.1} parent=27 // pred_check
          %p657 = pneg %p393
        $region78: #{tpu_custom_call.1} parent=27 // pred_check_branch
          %659 = sbr.rel (%p657) target = $region80
        $region79: #{tpu_custom_call.1} parent=27 // pred_region
          %p660 = scmp.lt.s32.totalorder %s36, 1
          %s661 = scalar_select %p660, %s36, 1
          %s662 = smul.addr %s661, 4
          %s663 = smul.addr %s662, 4
          %s664 = scalar_lea.vmem %s13, %s663
        $region80: #{tpu_custom_call.1} parent=27 // pred_fallthru
          _
        // Predicated region
        $region81: #{tpu_custom_call.1} parent=27 // pred_check
          %p665 = pneg %p419
        $region82: #{tpu_custom_call.1} parent=27 // pred_check_branch
          %667 = sbr.rel (%p665) target = $region84
        $region83: #{tpu_custom_call.1} parent=27 // pred_region
          %p668 = scmp.lt.s32.totalorder %s36, 1
          %s669 = scalar_select %p668, %s36, 1
          %s670 = scalar_lea.vmem %s14, %s669
        $region84: #{tpu_custom_call.1} parent=27 // pred_fallthru
          _
        // Predicated region
        $region85: #{tpu_custom_call.1} parent=27 // pred_check
          %p671 = pneg %p445
        $region86: #{tpu_custom_call.1} parent=27 // pred_check_branch
          %673 = sbr.rel (%p671) target = $region88
        $region87: #{tpu_custom_call.1} parent=27 // pred_region
          %p674 = scmp.lt.s32.totalorder %s36, 1
          %s675 = scalar_select %p674, %s36, 1
          %s676 = smul.addr %s675, 8
          %s677 = smul.addr %s676, 4
          %s678 = scalar_lea.vmem %s15, %s677
        $region88: #{tpu_custom_call.1} parent=27 // pred_fallthru
          _
        // Predicated region
        $region89: #{tpu_custom_call.1} parent=27 // pred_check
          %p679 = pneg %p471
        $region90: #{tpu_custom_call.1} parent=27 // pred_check_branch
          %681 = sbr.rel (%p679) target = $region92
        $region91: #{tpu_custom_call.1} parent=27 // pred_region
          %p682 = scmp.lt.s32.totalorder %s36, 1
          %s683 = scalar_select %p682, %s36, 1
          %s684 = scalar_lea.vmem %s16, %s683
        $region92: #{tpu_custom_call.1} parent=27 // pred_fallthru
          _
      $region28: #{tpu_custom_call.1} parent=5 // pred_fallthru
        _
      %p685 = scmp.le.s32.totalorder 1, %s28
      %p686 = scmp.lt.s32.totalorder %s28, 5
      %p687 = pnand %p685, %p686
      %p688 = pneg %p687
      // Predicated region
      $region93: #{tpu_custom_call.1} parent=5 // pred_check
        _
      $region94: #{tpu_custom_call.1} parent=5 // pred_check_branch
        %690 = sbr.rel (%p687) target = $region96
      $region95: #{tpu_custom_call.1} parent=5 // pred_region
        %s691 = ssub.s32 %s28, 1
        %p692 = scmp.lt.s32.totalorder %s37, 1
        %s693 = scalar_select %p692, %s37, 1
        %s694 = smul.addr %s693, 8
        %s695 = scalar_lea.vmem %s0, %s694
        %p696 = pneg %p66
        %p697 = pneg %p63
        %p698 = pneg %p87
        %p699 = pneg %p84
        %p700 = scmp.lt.s32.totalorder %s37, 1
        %s701 = scalar_select %p700, %s37, 1
        %s702 = scalar_lea.vmem %s2, %s701
        %p703 = pneg %p113
        %p704 = pneg %p110
        %p705 = scmp.lt.s32.totalorder %s38, 1
        %s706 = scalar_select %p705, %s38, 1
        %s707 = scalar_lea.vmem %s3, %s706
        %p708 = pneg %p139
        %p709 = pneg %p136
        %p710 = scmp.lt.s32.totalorder %s38, 1
        %s711 = scalar_select %p710, %s38, 1
        %s712 = scalar_lea.vmem %s4, %s711
        %p713 = pneg %p165
        %p714 = pneg %p162
        %p715 = scmp.lt.s32.totalorder %s38, 1
        %s716 = scalar_select %p715, %s38, 1
        %s717 = smul.addr %s716, 16
        %s718 = smul.addr %s717, 4
        %s719 = scalar_lea.vmem %s5, %s718
        %p720 = pneg %p191
        %p721 = pneg %p188
        %p722 = scmp.lt.s32.totalorder %s38, 1
        %s723 = scalar_select %p722, %s38, 1
        %s724 = smul.addr %s723, 4
        %s725 = scalar_lea.vmem %s6, %s724
        %p726 = pneg %p217
        %p727 = pneg %p214
        %p728 = scmp.lt.s32.totalorder %s38, 1
        %s729 = scalar_select %p728, %s38, 1
        %s730 = smul.addr %s729, 16
        %s731 = smul.addr %s730, 4
        %s732 = scalar_lea.vmem %s7, %s731
        %p733 = pneg %p243
        %p734 = pneg %p240
        %p735 = scmp.lt.s32.totalorder %s38, 1
        %s736 = scalar_select %p735, %s38, 1
        %s737 = smul.addr %s736, 4
        %s738 = scalar_lea.vmem %s8, %s737
        %p739 = pneg %p269
        %p740 = pneg %p266
        %p741 = scmp.lt.s32.totalorder %s38, 1
        %s742 = scalar_select %p741, %s38, 1
        %s743 = smul.addr %s742, 16
        %s744 = smul.addr %s743, 4
        %s745 = scalar_lea.vmem %s9, %s744
        %p746 = pneg %p295
        %p747 = pneg %p292
        %p748 = scmp.lt.s32.totalorder %s38, 1
        %s749 = scalar_select %p748, %s38, 1
        %s750 = smul.addr %s749, 4
        %s751 = scalar_lea.vmem %s10, %s750
        %p752 = pneg %p321
        %p753 = pneg %p318
        %p754 = scmp.lt.s32.totalorder %s38, 1
        %s755 = scalar_select %p754, %s38, 1
        %s756 = smul.addr %s755, 4
        %s757 = smul.addr %s756, 4
        %s758 = scalar_lea.vmem %s11, %s757
        %p759 = pneg %p347
        %p760 = pneg %p344
        %p761 = scmp.lt.s32.totalorder %s38, 1
        %s762 = scalar_select %p761, %s38, 1
        %s763 = scalar_lea.vmem %s12, %s762
        %p764 = pneg %p373
        %p765 = pneg %p370
        %p766 = scmp.lt.s32.totalorder %s38, 1
        %s767 = scalar_select %p766, %s38, 1
        %s768 = smul.addr %s767, 4
        %s769 = smul.addr %s768, 4
        %s770 = scalar_lea.vmem %s13, %s769
        %p771 = pneg %p399
        %p772 = pneg %p396
        %p773 = scmp.lt.s32.totalorder %s38, 1
        %s774 = scalar_select %p773, %s38, 1
        %s775 = scalar_lea.vmem %s14, %s774
        %p776 = pneg %p425
        %p777 = pneg %p422
        %p778 = scmp.lt.s32.totalorder %s38, 1
        %s779 = scalar_select %p778, %s38, 1
        %s780 = smul.addr %s779, 8
        %s781 = smul.addr %s780, 4
        %s782 = scalar_lea.vmem %s15, %s781
        %p783 = pneg %p451
        %p784 = pneg %p448
        %p785 = scmp.lt.s32.totalorder %s38, 1
        %s786 = scalar_select %p785, %s38, 1
        %s787 = scalar_lea.vmem %s16, %s786
        %p788 = pneg %p477
        %p789 = pneg %p474
        %p790 = pneg %p498
        %p791 = pneg %p495
        %p792 = pneg %p519
        %p793 = pneg %p516
        %p794 = pneg %p545
        %p795 = pneg %p542
        %s796 = sand.u32 %s532, 1
        %s797 = scalar_lea.sflag [#allocation4], %s796
        %s798 = sand.u32 %s532, 1
        %s799 = smul.addr %s798, 8
        %s800 = scalar_lea.vmem [#allocation3], %s799
        %p801 = scmp.lt.s32.totalorder %s37, 1
        %s802 = scalar_select %p801, %s37, 1
        %s803 = smul.addr %s802, 8
        %s804 = scalar_lea.vmem %s0, %s803
        %p805 = scmp.lt.s32.totalorder %s37, 1
        %s806 = scalar_select %p805, %s37, 1
        %s807 = scalar_lea.vmem %s2, %s806
        %p808 = scmp.lt.s32.totalorder %s38, 1
        %s809 = scalar_select %p808, %s38, 1
        %s810 = scalar_lea.vmem %s3, %s809
        %p811 = scmp.lt.s32.totalorder %s38, 1
        %s812 = scalar_select %p811, %s38, 1
        %s813 = scalar_lea.vmem %s4, %s812
        %p814 = scmp.lt.s32.totalorder %s38, 1
        %s815 = scalar_select %p814, %s38, 1
        %s816 = smul.addr %s815, 16
        %s817 = smul.addr %s816, 4
        %s818 = scalar_lea.vmem %s5, %s817
        %p819 = scmp.lt.s32.totalorder %s38, 1
        %s820 = scalar_select %p819, %s38, 1
        %s821 = smul.addr %s820, 4
        %s822 = scalar_lea.vmem %s6, %s821
        %p823 = scmp.lt.s32.totalorder %s38, 1
        %s824 = scalar_select %p823, %s38, 1
        %s825 = smul.addr %s824, 16
        %s826 = smul.addr %s825, 4
        %s827 = scalar_lea.vmem %s7, %s826
        %p828 = scmp.lt.s32.totalorder %s38, 1
        %s829 = scalar_select %p828, %s38, 1
        %s830 = smul.addr %s829, 4
        %s831 = scalar_lea.vmem %s8, %s830
        %p832 = scmp.lt.s32.totalorder %s38, 1
        %s833 = scalar_select %p832, %s38, 1
        %s834 = smul.addr %s833, 16
        %s835 = smul.addr %s834, 4
        %s836 = scalar_lea.vmem %s9, %s835
        %p837 = scmp.lt.s32.totalorder %s38, 1
        %s838 = scalar_select %p837, %s38, 1
        %s839 = smul.addr %s838, 4
        %s840 = scalar_lea.vmem %s10, %s839
        %p841 = scmp.lt.s32.totalorder %s38, 1
        %s842 = scalar_select %p841, %s38, 1
        %s843 = smul.addr %s842, 4
        %s844 = smul.addr %s843, 4
        %s845 = scalar_lea.vmem %s11, %s844
        %p846 = scmp.lt.s32.totalorder %s38, 1
        %s847 = scalar_select %p846, %s38, 1
        %s848 = scalar_lea.vmem %s12, %s847
        %p849 = scmp.lt.s32.totalorder %s38, 1
        %s850 = scalar_select %p849, %s38, 1
        %s851 = smul.addr %s850, 4
        %s852 = smul.addr %s851, 4
        %s853 = scalar_lea.vmem %s13, %s852
        %p854 = scmp.lt.s32.totalorder %s38, 1
        %s855 = scalar_select %p854, %s38, 1
        %s856 = scalar_lea.vmem %s14, %s855
        %p857 = scmp.lt.s32.totalorder %s38, 1
        %s858 = scalar_select %p857, %s38, 1
        %s859 = smul.addr %s858, 8
        %s860 = smul.addr %s859, 4
        %s861 = scalar_lea.vmem %s15, %s860
        %p862 = scmp.lt.s32.totalorder %s38, 1
        %s863 = scalar_select %p862, %s38, 1
        %s864 = scalar_lea.vmem %s16, %s863
        %p866 = scmp.eq.s32.totalorder %s38, 0
        // Predicated region
        $region97: #{tpu_custom_call.1} parent=95 // pred_check
          %p867 = pneg %p866
        $region98: #{tpu_custom_call.1} parent=95 // pred_check_branch
          %869 = sbr.rel (%p867) target = $region100
        $region99: #{tpu_custom_call.1} parent=95 // pred_region
          %v870 = vld [vmem:[%s804] sm:$0xff]
          %v871 = vmul.f32 %v870, 5.656854
          %v872 = vld [vmem:[%s1] sm:$0xff]
          %v873 = vadd.f32 %v871, %v872
          %vm874 = vcmask 261120
          %875 = vst.msk [vmem:[#allocation2] sm:$0xff] %vm874, %v873
        $region100: #{tpu_custom_call.1} parent=95 // pred_fallthru
          _
        %v876 = vld [vmem:[#allocation2] sm:$0xff]
        %v877 = vld [vmem:[%s807] sm:$0x1]
        %vm878 = vcmp.gt.f32.partialorder %v877, 0.0
        %v879 = vsel %vm878, 0.0, -1e+09
        %v880 = vld [vmem:[%s810] sm:$0x1]
        %v881 = vld [vmem:[%s813] sm:$0x1]
        %vm882 = vcmask 261120
        %v883 = vsel %vm882, %v876, 0.0
        %884 = vadd.xlane.f32.xlu0 %v883
        %v885 = vpop.xlane.xlu0 %884
        %v886 = vrcp.pop 32.0
        %v887 = vmul.f32 %v885, %v886
        %v888 = vsub.f32 %v876, %v887
        %v889 = vmul.f32 %v888, %v888
        %v890 = vsel %vm882, %v889, 0.0
        %891 = vadd.xlane.f32.xlu0 %v890
        %v892 = vpop.xlane.xlu0 %891
        %v893 = vmul.f32 %v892, %v886
        %v894 = vadd.f32 %v893, 1e-05
        %v895 = vrsqrt.pop %v894
        %v896 = vmul.f32 %v888, %v895
        %v898 = vlaneseq
        %v899 = vshrl.u32 %v898, 7
        %v900 = vsub.s32 0, %v899
        %v901 = vrot.slane %v880, %v900
        %v903 = vmul.f32 %v896, %v901
        %v905 = vlaneseq
        %v906 = vshrl.u32 %v905, 7
        %v907 = vsub.s32 0, %v906
        %v908 = vrot.slane %v881, %v907
        %v910 = vadd.f32 %v903, %v908
        %v911 = vpack.c.bf16 %v910, %v910
        %v912 = vld [vmem:[%s818] sm:$0xf]
        %v913 = vld [vmem:[%s818 + $0x4] sm:$0xf]
        %v914 = vld [vmem:[%s818 + $0x8] sm:$0xf]
        %v915 = vld [vmem:[%s818 + $0xc] sm:$0xf]
        %v916 = vld [vmem:[%s818 + $0x10] sm:$0xf]
        %v917 = vld [vmem:[%s818 + $0x14] sm:$0xf]
        %v918 = vld [vmem:[%s818 + $0x18] sm:$0xf]
        %v919 = vld [vmem:[%s818 + $0x1c] sm:$0xf]
        %v920 = vld [vmem:[%s818 + $0x20] sm:$0xf]
        %v921 = vld [vmem:[%s818 + $0x24] sm:$0xf]
        %v922 = vld [vmem:[%s818 + $0x28] sm:$0xf]
        %v923 = vld [vmem:[%s818 + $0x2c] sm:$0xf]
        %v924 = vld [vmem:[%s818 + $0x30] sm:$0xf]
        %v925 = vld [vmem:[%s818 + $0x34] sm:$0xf]
        %v926 = vld [vmem:[%s818 + $0x38] sm:$0xf]
        %v927 = vld [vmem:[%s818 + $0x3c] sm:$0xf]
        %v928 = vld [vmem:[%s822] sm:$0x1]
        %v929 = vld [vmem:[%s822 + $0x1] sm:$0x1]
        %v930 = vld [vmem:[%s822 + $0x2] sm:$0x1]
        %v931 = vld [vmem:[%s822 + $0x3] sm:$0x1]
        %v936 = vlaneseq
        %v937 = vshrl.u32 %v936, 7
        %v938 = vsub.s32 0, %v937
        %v939 = vrot.slane %v928, %v938
        %v940 = vlaneseq
        %v941 = vshrl.u32 %v940, 7
        %v942 = vsub.s32 0, %v941
        %v943 = vrot.slane %v929, %v942
        %v944 = vlaneseq
        %v945 = vshrl.u32 %v944, 7
        %v946 = vsub.s32 0, %v945
        %v947 = vrot.slane %v930, %v946
        %v948 = vlaneseq
        %v949 = vshrl.u32 %v948, 7
        %v950 = vsub.s32 0, %v949
        %v951 = vrot.slane %v931, %v950
        %v960 = vunpack.c.l.b16 %v912
        %v961 = vunpack.c.l.b16 %v913
        %v962 = vunpack.c.l.b16 %v914
        %v963 = vunpack.c.l.b16 %v915
        %v964 = vpack.c.b16 %v961, %v960
        %v965 = vpack.c.b16 %v963, %v962
        %v969 = vsel %vm882, %v911, 0
        %971 = vmatprep.subr.bf16.mxu0 0
        %972 = vmatpush1.bf16.msra.mxu0 0
        %973 = vmatprep.subr.bf16.mxu0 0
        %974 = vmatpush1.bf16.msra.mxu0 0
        %975 = vmatprep.subr.bf16.mxu0 0
        %976 = vmatpush1.bf16.msra.mxu0 0
        %977 = vmatprep.subr.bf16.mxu0 0
        %978 = vmatpush1.bf16.msra.mxu0 0
        %979 = vmatprep.subr.bf16.mxu0 0
        %980 = vmatpush1.bf16.msra.mxu0 0
        %981 = vmatprep.subr.bf16.mxu0 0
        %982 = vmatpush1.bf16.msra.mxu0 0
        %983 = vmatprep.subr.bf16.mxu0 0
        %984 = vmatpush1.bf16.msra.mxu0 %v965
        %985 = vmatprep.subr.bf16.mxu0 0
        %986 = vmatpush1.bf16.msra.mxu0 %v964
        %987 = vmatprep.subr.bf16.mxu0 0
        %988 = vmatpush2.bf16.msra.mxu0 0
        %989 = vmatprep.subr.bf16.mxu0 0
        %990 = vmatpush2.bf16.msra.mxu0 0
        %991 = vmatprep.subr.bf16.mxu0 0
        %992 = vmatpush2.bf16.msra.mxu0 0
        %993 = vmatprep.subr.bf16.mxu0 0
        %994 = vmatpush2.bf16.msra.mxu0 0
        %995 = vmatprep.subr.bf16.mxu0 0
        %996 = vmatpush2.bf16.msra.mxu0 0
        %997 = vmatprep.subr.bf16.mxu0 0
        %998 = vmatpush2.bf16.msra.mxu0 0
        %999 = vmatprep.subr.bf16.mxu0 0
        %1000 = vmatpush2.bf16.msra.mxu0 0
        %1001 = vmatprep.subr.bf16.mxu0 0
        %1002 = vmatpush2.bf16.msra.mxu0 0
        %1003 = vmatprep.mubr.bf16.mxu0 0
        %1004 = vmatmul.mubr.bf16.gmra.mxu0 %v969
        %v1005 = vpop.f32.mrf.mxu0
        %v1006 = vadd.f32 %v939, %v1005
        %v1007 = vpop.f32.mrf.mxu0
        %v1008 = vpop.f32.mrf.mxu0
        %v1009 = vpop.f32.mrf.mxu0
        %1010 = vdwg.mxu0
        %v1015 = vunpack.c.l.b16 %v916
        %v1016 = vunpack.c.l.b16 %v917
        %v1017 = vunpack.c.l.b16 %v918
        %v1018 = vunpack.c.l.b16 %v919
        %v1019 = vpack.c.b16 %v1016, %v1015
        %v1020 = vpack.c.b16 %v1018, %v1017
        %1023 = vmatprep.subr.bf16.mxu0 0
        %1024 = vmatpush1.bf16.msra.mxu0 0
        %1025 = vmatprep.subr.bf16.mxu0 0
        %1026 = vmatpush1.bf16.msra.mxu0 0
        %1027 = vmatprep.subr.bf16.mxu0 0
        %1028 = vmatpush1.bf16.msra.mxu0 0
        %1029 = vmatprep.subr.bf16.mxu0 0
        %1030 = vmatpush1.bf16.msra.mxu0 0
        %1031 = vmatprep.subr.bf16.mxu0 0
        %1032 = vmatpush1.bf16.msra.mxu0 0
        %1033 = vmatprep.subr.bf16.mxu0 0
        %1034 = vmatpush1.bf16.msra.mxu0 0
        %1035 = vmatprep.subr.bf16.mxu0 0
        %1036 = vmatpush1.bf16.msra.mxu0 %v1020
        %1037 = vmatprep.subr.bf16.mxu0 0
        %1038 = vmatpush1.bf16.msra.mxu0 %v1019
        %1039 = vmatprep.subr.bf16.mxu0 0
        %1040 = vmatpush2.bf16.msra.mxu0 0
        %1041 = vmatprep.subr.bf16.mxu0 0
        %1042 = vmatpush2.bf16.msra.mxu0 0
        %1043 = vmatprep.subr.bf16.mxu0 0
        %1044 = vmatpush2.bf16.msra.mxu0 0
        %1045 = vmatprep.subr.bf16.mxu0 0
        %1046 = vmatpush2.bf16.msra.mxu0 0
        %1047 = vmatprep.subr.bf16.mxu0 0
        %1048 = vmatpush2.bf16.msra.mxu0 0
        %1049 = vmatprep.subr.bf16.mxu0 0
        %1050 = vmatpush2.bf16.msra.mxu0 0
        %1051 = vmatprep.subr.bf16.mxu0 0
        %1052 = vmatpush2.bf16.msra.mxu0 0
        %1053 = vmatprep.subr.bf16.mxu0 0
        %1054 = vmatpush2.bf16.msra.mxu0 0
        %1055 = vmatprep.mubr.bf16.mxu0 0
        %1056 = vmatmul.mubr.bf16.gmra.mxu0 %v969
        %v1057 = vpop.f32.mrf.mxu0
        %v1058 = vadd.f32 %v943, %v1057
        %v1059 = vpop.f32.mrf.mxu0
        %v1060 = vpop.f32.mrf.mxu0
        %v1061 = vpop.f32.mrf.mxu0
        %1062 = vdwg.mxu0
        %v1067 = vunpack.c.l.b16 %v920
        %v1068 = vunpack.c.l.b16 %v921
        %v1069 = vunpack.c.l.b16 %v922
        %v1070 = vunpack.c.l.b16 %v923
        %v1071 = vpack.c.b16 %v1068, %v1067
        %v1072 = vpack.c.b16 %v1070, %v1069
        %1075 = vmatprep.subr.bf16.mxu0 0
        %1076 = vmatpush1.bf16.msra.mxu0 0
        %1077 = vmatprep.subr.bf16.mxu0 0
        %1078 = vmatpush1.bf16.msra.mxu0 0
        %1079 = vmatprep.subr.bf16.mxu0 0
        %1080 = vmatpush1.bf16.msra.mxu0 0
        %1081 = vmatprep.subr.bf16.mxu0 0
        %1082 = vmatpush1.bf16.msra.mxu0 0
        %1083 = vmatprep.subr.bf16.mxu0 0
        %1084 = vmatpush1.bf16.msra.mxu0 0
        %1085 = vmatprep.subr.bf16.mxu0 0
        %1086 = vmatpush1.bf16.msra.mxu0 0
        %1087 = vmatprep.subr.bf16.mxu0 0
        %1088 = vmatpush1.bf16.msra.mxu0 %v1072
        %1089 = vmatprep.subr.bf16.mxu0 0
        %1090 = vmatpush1.bf16.msra.mxu0 %v1071
        %1091 = vmatprep.subr.bf16.mxu0 0
        %1092 = vmatpush2.bf16.msra.mxu0 0
        %1093 = vmatprep.subr.bf16.mxu0 0
        %1094 = vmatpush2.bf16.msra.mxu0 0
        %1095 = vmatprep.subr.bf16.mxu0 0
        %1096 = vmatpush2.bf16.msra.mxu0 0
        %1097 = vmatprep.subr.bf16.mxu0 0
        %1098 = vmatpush2.bf16.msra.mxu0 0
        %1099 = vmatprep.subr.bf16.mxu0 0
        %1100 = vmatpush2.bf16.msra.mxu0 0
        %1101 = vmatprep.subr.bf16.mxu0 0
        %1102 = vmatpush2.bf16.msra.mxu0 0
        %1103 = vmatprep.subr.bf16.mxu0 0
        %1104 = vmatpush2.bf16.msra.mxu0 0
        %1105 = vmatprep.subr.bf16.mxu0 0
        %1106 = vmatpush2.bf16.msra.mxu0 0
        %1107 = vmatprep.mubr.bf16.mxu0 0
        %1108 = vmatmul.mubr.bf16.gmra.mxu0 %v969
        %v1109 = vpop.f32.mrf.mxu0
        %v1110 = vadd.f32 %v947, %v1109
        %v1111 = vpop.f32.mrf.mxu0
        %v1112 = vpop.f32.mrf.mxu0
        %v1113 = vpop.f32.mrf.mxu0
        %1114 = vdwg.mxu0
        %v1119 = vunpack.c.l.b16 %v924
        %v1120 = vunpack.c.l.b16 %v925
        %v1121 = vunpack.c.l.b16 %v926
        %v1122 = vunpack.c.l.b16 %v927
        %v1123 = vpack.c.b16 %v1120, %v1119
        %v1124 = vpack.c.b16 %v1122, %v1121
        %1127 = vmatprep.subr.bf16.mxu0 0
        %1128 = vmatpush1.bf16.msra.mxu0 0
        %1129 = vmatprep.subr.bf16.mxu0 0
        %1130 = vmatpush1.bf16.msra.mxu0 0
        %1131 = vmatprep.subr.bf16.mxu0 0
        %1132 = vmatpush1.bf16.msra.mxu0 0
        %1133 = vmatprep.subr.bf16.mxu0 0
        %1134 = vmatpush1.bf16.msra.mxu0 0
        %1135 = vmatprep.subr.bf16.mxu0 0
        %1136 = vmatpush1.bf16.msra.mxu0 0
        %1137 = vmatprep.subr.bf16.mxu0 0
        %1138 = vmatpush1.bf16.msra.mxu0 0
        %1139 = vmatprep.subr.bf16.mxu0 0
        %1140 = vmatpush1.bf16.msra.mxu0 %v1124
        %1141 = vmatprep.subr.bf16.mxu0 0
        %1142 = vmatpush1.bf16.msra.mxu0 %v1123
        %1143 = vmatprep.subr.bf16.mxu0 0
        %1144 = vmatpush2.bf16.msra.mxu0 0
        %1145 = vmatprep.subr.bf16.mxu0 0
        %1146 = vmatpush2.bf16.msra.mxu0 0
        %1147 = vmatprep.subr.bf16.mxu0 0
        %1148 = vmatpush2.bf16.msra.mxu0 0
        %1149 = vmatprep.subr.bf16.mxu0 0
        %1150 = vmatpush2.bf16.msra.mxu0 0
        %1151 = vmatprep.subr.bf16.mxu0 0
        %1152 = vmatpush2.bf16.msra.mxu0 0
        %1153 = vmatprep.subr.bf16.mxu0 0
        %1154 = vmatpush2.bf16.msra.mxu0 0
        %1155 = vmatprep.subr.bf16.mxu0 0
        %1156 = vmatpush2.bf16.msra.mxu0 0
        %1157 = vmatprep.subr.bf16.mxu0 0
        %1158 = vmatpush2.bf16.msra.mxu0 0
        %1159 = vmatprep.mubr.bf16.mxu0 0
        %1160 = vmatmul.mubr.bf16.gmra.mxu0 %v969
        %v1161 = vpop.f32.mrf.mxu0
        %v1162 = vadd.f32 %v951, %v1161
        %v1163 = vpop.f32.mrf.mxu0
        %v1164 = vpop.f32.mrf.mxu0
        %v1165 = vpop.f32.mrf.mxu0
        %1166 = vdwg.mxu0
        %v1167 = vld [vmem:[%s827] sm:$0xf]
        %v1168 = vld [vmem:[%s827 + $0x4] sm:$0xf]
        %v1169 = vld [vmem:[%s827 + $0x8] sm:$0xf]
        %v1170 = vld [vmem:[%s827 + $0xc] sm:$0xf]
        %v1171 = vld [vmem:[%s827 + $0x10] sm:$0xf]
        %v1172 = vld [vmem:[%s827 + $0x14] sm:$0xf]
        %v1173 = vld [vmem:[%s827 + $0x18] sm:$0xf]
        %v1174 = vld [vmem:[%s827 + $0x1c] sm:$0xf]
        %v1175 = vld [vmem:[%s827 + $0x20] sm:$0xf]
        %v1176 = vld [vmem:[%s827 + $0x24] sm:$0xf]
        %v1177 = vld [vmem:[%s827 + $0x28] sm:$0xf]
        %v1178 = vld [vmem:[%s827 + $0x2c] sm:$0xf]
        %v1179 = vld [vmem:[%s827 + $0x30] sm:$0xf]
        %v1180 = vld [vmem:[%s827 + $0x34] sm:$0xf]
        %v1181 = vld [vmem:[%s827 + $0x38] sm:$0xf]
        %v1182 = vld [vmem:[%s827 + $0x3c] sm:$0xf]
        %v1183 = vld [vmem:[%s831] sm:$0x1]
        %v1184 = vld [vmem:[%s831 + $0x1] sm:$0x1]
        %v1185 = vld [vmem:[%s831 + $0x2] sm:$0x1]
        %v1186 = vld [vmem:[%s831 + $0x3] sm:$0x1]
        %v1191 = vlaneseq
        %v1192 = vshrl.u32 %v1191, 7
        %v1193 = vsub.s32 0, %v1192
        %v1194 = vrot.slane %v1183, %v1193
        %v1195 = vlaneseq
        %v1196 = vshrl.u32 %v1195, 7
        %v1197 = vsub.s32 0, %v1196
        %v1198 = vrot.slane %v1184, %v1197
        %v1199 = vlaneseq
        %v1200 = vshrl.u32 %v1199, 7
        %v1201 = vsub.s32 0, %v1200
        %v1202 = vrot.slane %v1185, %v1201
        %v1203 = vlaneseq
        %v1204 = vshrl.u32 %v1203, 7
        %v1205 = vsub.s32 0, %v1204
        %v1206 = vrot.slane %v1186, %v1205
        %v1215 = vunpack.c.l.b16 %v1167
        %v1216 = vunpack.c.l.b16 %v1168
        %v1217 = vunpack.c.l.b16 %v1169
        %v1218 = vunpack.c.l.b16 %v1170
        %v1219 = vpack.c.b16 %v1216, %v1215
        %v1220 = vpack.c.b16 %v1218, %v1217
        %1223 = vmatprep.subr.bf16.mxu0 0
        %1224 = vmatpush1.bf16.msra.mxu0 0
        %1225 = vmatprep.subr.bf16.mxu0 0
        %1226 = vmatpush1.bf16.msra.mxu0 0
        %1227 = vmatprep.subr.bf16.mxu0 0
        %1228 = vmatpush1.bf16.msra.mxu0 0
        %1229 = vmatprep.subr.bf16.mxu0 0
        %1230 = vmatpush1.bf16.msra.mxu0 0
        %1231 = vmatprep.subr.bf16.mxu0 0
        %1232 = vmatpush1.bf16.msra.mxu0 0
        %1233 = vmatprep.subr.bf16.mxu0 0
        %1234 = vmatpush1.bf16.msra.mxu0 0
        %1235 = vmatprep.subr.bf16.mxu0 0
        %1236 = vmatpush1.bf16.msra.mxu0 %v1220
        %1237 = vmatprep.subr.bf16.mxu0 0
        %1238 = vmatpush1.bf16.msra.mxu0 %v1219
        %1239 = vmatprep.subr.bf16.mxu0 0
        %1240 = vmatpush2.bf16.msra.mxu0 0
        %1241 = vmatprep.subr.bf16.mxu0 0
        %1242 = vmatpush2.bf16.msra.mxu0 0
        %1243 = vmatprep.subr.bf16.mxu0 0
        %1244 = vmatpush2.bf16.msra.mxu0 0
        %1245 = vmatprep.subr.bf16.mxu0 0
        %1246 = vmatpush2.bf16.msra.mxu0 0
        %1247 = vmatprep.subr.bf16.mxu0 0
        %1248 = vmatpush2.bf16.msra.mxu0 0
        %1249 = vmatprep.subr.bf16.mxu0 0
        %1250 = vmatpush2.bf16.msra.mxu0 0
        %1251 = vmatprep.subr.bf16.mxu0 0
        %1252 = vmatpush2.bf16.msra.mxu0 0
        %1253 = vmatprep.subr.bf16.mxu0 0
        %1254 = vmatpush2.bf16.msra.mxu0 0
        %1255 = vmatprep.mubr.bf16.mxu0 0
        %1256 = vmatmul.mubr.bf16.gmra.mxu0 %v969
        %v1257 = vpop.f32.mrf.mxu0
        %v1258 = vadd.f32 %v1194, %v1257
        %v1259 = vpop.f32.mrf.mxu0
        %v1260 = vpop.f32.mrf.mxu0
        %v1261 = vpop.f32.mrf.mxu0
        %1262 = vdwg.mxu0
        %v1267 = vunpack.c.l.b16 %v1171
        %v1268 = vunpack.c.l.b16 %v1172
        %v1269 = vunpack.c.l.b16 %v1173
        %v1270 = vunpack.c.l.b16 %v1174
        %v1271 = vpack.c.b16 %v1268, %v1267
        %v1272 = vpack.c.b16 %v1270, %v1269
        %1275 = vmatprep.subr.bf16.mxu0 0
        %1276 = vmatpush1.bf16.msra.mxu0 0
        %1277 = vmatprep.subr.bf16.mxu0 0
        %1278 = vmatpush1.bf16.msra.mxu0 0
        %1279 = vmatprep.subr.bf16.mxu0 0
        %1280 = vmatpush1.bf16.msra.mxu0 0
        %1281 = vmatprep.subr.bf16.mxu0 0
        %1282 = vmatpush1.bf16.msra.mxu0 0
        %1283 = vmatprep.subr.bf16.mxu0 0
        %1284 = vmatpush1.bf16.msra.mxu0 0
        %1285 = vmatprep.subr.bf16.mxu0 0
        %1286 = vmatpush1.bf16.msra.mxu0 0
        %1287 = vmatprep.subr.bf16.mxu0 0
        %1288 = vmatpush1.bf16.msra.mxu0 %v1272
        %1289 = vmatprep.subr.bf16.mxu0 0
        %1290 = vmatpush1.bf16.msra.mxu0 %v1271
        %1291 = vmatprep.subr.bf16.mxu0 0
        %1292 = vmatpush2.bf16.msra.mxu0 0
        %1293 = vmatprep.subr.bf16.mxu0 0
        %1294 = vmatpush2.bf16.msra.mxu0 0
        %1295 = vmatprep.subr.bf16.mxu0 0
        %1296 = vmatpush2.bf16.msra.mxu0 0
        %1297 = vmatprep.subr.bf16.mxu0 0
        %1298 = vmatpush2.bf16.msra.mxu0 0
        %1299 = vmatprep.subr.bf16.mxu0 0
        %1300 = vmatpush2.bf16.msra.mxu0 0
        %1301 = vmatprep.subr.bf16.mxu0 0
        %1302 = vmatpush2.bf16.msra.mxu0 0
        %1303 = vmatprep.subr.bf16.mxu0 0
        %1304 = vmatpush2.bf16.msra.mxu0 0
        %1305 = vmatprep.subr.bf16.mxu0 0
        %1306 = vmatpush2.bf16.msra.mxu0 0
        %1307 = vmatprep.mubr.bf16.mxu0 0
        %1308 = vmatmul.mubr.bf16.gmra.mxu0 %v969
        %v1309 = vpop.f32.mrf.mxu0
        %v1310 = vadd.f32 %v1198, %v1309
        %v1311 = vpop.f32.mrf.mxu0
        %v1312 = vpop.f32.mrf.mxu0
        %v1313 = vpop.f32.mrf.mxu0
        %1314 = vdwg.mxu0
        %v1319 = vunpack.c.l.b16 %v1175
        %v1320 = vunpack.c.l.b16 %v1176
        %v1321 = vunpack.c.l.b16 %v1177
        %v1322 = vunpack.c.l.b16 %v1178
        %v1323 = vpack.c.b16 %v1320, %v1319
        %v1324 = vpack.c.b16 %v1322, %v1321
        %1327 = vmatprep.subr.bf16.mxu0 0
        %1328 = vmatpush1.bf16.msra.mxu0 0
        %1329 = vmatprep.subr.bf16.mxu0 0
        %1330 = vmatpush1.bf16.msra.mxu0 0
        %1331 = vmatprep.subr.bf16.mxu0 0
        %1332 = vmatpush1.bf16.msra.mxu0 0
        %1333 = vmatprep.subr.bf16.mxu0 0
        %1334 = vmatpush1.bf16.msra.mxu0 0
        %1335 = vmatprep.subr.bf16.mxu0 0
        %1336 = vmatpush1.bf16.msra.mxu0 0
        %1337 = vmatprep.subr.bf16.mxu0 0
        %1338 = vmatpush1.bf16.msra.mxu0 0
        %1339 = vmatprep.subr.bf16.mxu0 0
        %1340 = vmatpush1.bf16.msra.mxu0 %v1324
        %1341 = vmatprep.subr.bf16.mxu0 0
        %1342 = vmatpush1.bf16.msra.mxu0 %v1323
        %1343 = vmatprep.subr.bf16.mxu0 0
        %1344 = vmatpush2.bf16.msra.mxu0 0
        %1345 = vmatprep.subr.bf16.mxu0 0
        %1346 = vmatpush2.bf16.msra.mxu0 0
        %1347 = vmatprep.subr.bf16.mxu0 0
        %1348 = vmatpush2.bf16.msra.mxu0 0
        %1349 = vmatprep.subr.bf16.mxu0 0
        %1350 = vmatpush2.bf16.msra.mxu0 0
        %1351 = vmatprep.subr.bf16.mxu0 0
        %1352 = vmatpush2.bf16.msra.mxu0 0
        %1353 = vmatprep.subr.bf16.mxu0 0
        %1354 = vmatpush2.bf16.msra.mxu0 0
        %1355 = vmatprep.subr.bf16.mxu0 0
        %1356 = vmatpush2.bf16.msra.mxu0 0
        %1357 = vmatprep.subr.bf16.mxu0 0
        %1358 = vmatpush2.bf16.msra.mxu0 0
        %1359 = vmatprep.mubr.bf16.mxu0 0
        %1360 = vmatmul.mubr.bf16.gmra.mxu0 %v969
        %v1361 = vpop.f32.mrf.mxu0
        %v1362 = vadd.f32 %v1202, %v1361
        %v1363 = vpop.f32.mrf.mxu0
        %v1364 = vpop.f32.mrf.mxu0
        %v1365 = vpop.f32.mrf.mxu0
        %1366 = vdwg.mxu0
        %v1371 = vunpack.c.l.b16 %v1179
        %v1372 = vunpack.c.l.b16 %v1180
        %v1373 = vunpack.c.l.b16 %v1181
        %v1374 = vunpack.c.l.b16 %v1182
        %v1375 = vpack.c.b16 %v1372, %v1371
        %v1376 = vpack.c.b16 %v1374, %v1373
        %1379 = vmatprep.subr.bf16.mxu0 0
        %1380 = vmatpush1.bf16.msra.mxu0 0
        %1381 = vmatprep.subr.bf16.mxu0 0
        %1382 = vmatpush1.bf16.msra.mxu0 0
        %1383 = vmatprep.subr.bf16.mxu0 0
        %1384 = vmatpush1.bf16.msra.mxu0 0
        %1385 = vmatprep.subr.bf16.mxu0 0
        %1386 = vmatpush1.bf16.msra.mxu0 0
        %1387 = vmatprep.subr.bf16.mxu0 0
        %1388 = vmatpush1.bf16.msra.mxu0 0
        %1389 = vmatprep.subr.bf16.mxu0 0
        %1390 = vmatpush1.bf16.msra.mxu0 0
        %1391 = vmatprep.subr.bf16.mxu0 0
        %1392 = vmatpush1.bf16.msra.mxu0 %v1376
        %1393 = vmatprep.subr.bf16.mxu0 0
        %1394 = vmatpush1.bf16.msra.mxu0 %v1375
        %1395 = vmatprep.subr.bf16.mxu0 0
        %1396 = vmatpush2.bf16.msra.mxu0 0
        %1397 = vmatprep.subr.bf16.mxu0 0
        %1398 = vmatpush2.bf16.msra.mxu0 0
        %1399 = vmatprep.subr.bf16.mxu0 0
        %1400 = vmatpush2.bf16.msra.mxu0 0
        %1401 = vmatprep.subr.bf16.mxu0 0
        %1402 = vmatpush2.bf16.msra.mxu0 0
        %1403 = vmatprep.subr.bf16.mxu0 0
        %1404 = vmatpush2.bf16.msra.mxu0 0
        %1405 = vmatprep.subr.bf16.mxu0 0
        %1406 = vmatpush2.bf16.msra.mxu0 0
        %1407 = vmatprep.subr.bf16.mxu0 0
        %1408 = vmatpush2.bf16.msra.mxu0 0
        %1409 = vmatprep.subr.bf16.mxu0 0
        %1410 = vmatpush2.bf16.msra.mxu0 0
        %1411 = vmatprep.mubr.bf16.mxu0 0
        %1412 = vmatmul.mubr.bf16.gmra.mxu0 %v969
        %v1413 = vpop.f32.mrf.mxu0
        %v1414 = vadd.f32 %v1206, %v1413
        %v1415 = vpop.f32.mrf.mxu0
        %v1416 = vpop.f32.mrf.mxu0
        %v1417 = vpop.f32.mrf.mxu0
        %1418 = vdwg.mxu0
        %v1419 = vld [vmem:[%s836] sm:$0xf]
        %v1420 = vld [vmem:[%s836 + $0x4] sm:$0xf]
        %v1421 = vld [vmem:[%s836 + $0x8] sm:$0xf]
        %v1422 = vld [vmem:[%s836 + $0xc] sm:$0xf]
        %v1423 = vld [vmem:[%s836 + $0x10] sm:$0xf]
        %v1424 = vld [vmem:[%s836 + $0x14] sm:$0xf]
        %v1425 = vld [vmem:[%s836 + $0x18] sm:$0xf]
        %v1426 = vld [vmem:[%s836 + $0x1c] sm:$0xf]
        %v1427 = vld [vmem:[%s836 + $0x20] sm:$0xf]
        %v1428 = vld [vmem:[%s836 + $0x24] sm:$0xf]
        %v1429 = vld [vmem:[%s836 + $0x28] sm:$0xf]
        %v1430 = vld [vmem:[%s836 + $0x2c] sm:$0xf]
        %v1431 = vld [vmem:[%s836 + $0x30] sm:$0xf]
        %v1432 = vld [vmem:[%s836 + $0x34] sm:$0xf]
        %v1433 = vld [vmem:[%s836 + $0x38] sm:$0xf]
        %v1434 = vld [vmem:[%s836 + $0x3c] sm:$0xf]
        %v1435 = vld [vmem:[%s840] sm:$0x1]
        %v1436 = vld [vmem:[%s840 + $0x1] sm:$0x1]
        %v1437 = vld [vmem:[%s840 + $0x2] sm:$0x1]
        %v1438 = vld [vmem:[%s840 + $0x3] sm:$0x1]
        %v1443 = vlaneseq
        %v1444 = vshrl.u32 %v1443, 7
        %v1445 = vsub.s32 0, %v1444
        %v1446 = vrot.slane %v1435, %v1445
        %v1447 = vlaneseq
        %v1448 = vshrl.u32 %v1447, 7
        %v1449 = vsub.s32 0, %v1448
        %v1450 = vrot.slane %v1436, %v1449
        %v1451 = vlaneseq
        %v1452 = vshrl.u32 %v1451, 7
        %v1453 = vsub.s32 0, %v1452
        %v1454 = vrot.slane %v1437, %v1453
        %v1455 = vlaneseq
        %v1456 = vshrl.u32 %v1455, 7
        %v1457 = vsub.s32 0, %v1456
        %v1458 = vrot.slane %v1438, %v1457
        %v1467 = vunpack.c.l.b16 %v1419
        %v1468 = vunpack.c.l.b16 %v1420
        %v1469 = vunpack.c.l.b16 %v1421
        %v1470 = vunpack.c.l.b16 %v1422
        %v1471 = vpack.c.b16 %v1468, %v1467
        %v1472 = vpack.c.b16 %v1470, %v1469
        %1475 = vmatprep.subr.bf16.mxu0 0
        %1476 = vmatpush1.bf16.msra.mxu0 0
        %1477 = vmatprep.subr.bf16.mxu0 0
        %1478 = vmatpush1.bf16.msra.mxu0 0
        %1479 = vmatprep.subr.bf16.mxu0 0
        %1480 = vmatpush1.bf16.msra.mxu0 0
        %1481 = vmatprep.subr.bf16.mxu0 0
        %1482 = vmatpush1.bf16.msra.mxu0 0
        %1483 = vmatprep.subr.bf16.mxu0 0
        %1484 = vmatpush1.bf16.msra.mxu0 0
        %1485 = vmatprep.subr.bf16.mxu0 0
        %1486 = vmatpush1.bf16.msra.mxu0 0
        %1487 = vmatprep.subr.bf16.mxu0 0
        %1488 = vmatpush1.bf16.msra.mxu0 %v1472
        %1489 = vmatprep.subr.bf16.mxu0 0
        %1490 = vmatpush1.bf16.msra.mxu0 %v1471
        %1491 = vmatprep.subr.bf16.mxu0 0
        %1492 = vmatpush2.bf16.msra.mxu0 0
        %1493 = vmatprep.subr.bf16.mxu0 0
        %1494 = vmatpush2.bf16.msra.mxu0 0
        %1495 = vmatprep.subr.bf16.mxu0 0
        %1496 = vmatpush2.bf16.msra.mxu0 0
        %1497 = vmatprep.subr.bf16.mxu0 0
        %1498 = vmatpush2.bf16.msra.mxu0 0
        %1499 = vmatprep.subr.bf16.mxu0 0
        %1500 = vmatpush2.bf16.msra.mxu0 0
        %1501 = vmatprep.subr.bf16.mxu0 0
        %1502 = vmatpush2.bf16.msra.mxu0 0
        %1503 = vmatprep.subr.bf16.mxu0 0
        %1504 = vmatpush2.bf16.msra.mxu0 0
        %1505 = vmatprep.subr.bf16.mxu0 0
        %1506 = vmatpush2.bf16.msra.mxu0 0
        %1507 = vmatprep.mubr.bf16.mxu0 0
        %1508 = vmatmul.mubr.bf16.gmra.mxu0 %v969
        %v1509 = vpop.f32.mrf.mxu0
        %v1510 = vadd.f32 %v1446, %v1509
        %v1511 = vpop.f32.mrf.mxu0
        %v1512 = vpop.f32.mrf.mxu0
        %v1513 = vpop.f32.mrf.mxu0
        %1514 = vdwg.mxu0
        %v1519 = vunpack.c.l.b16 %v1423
        %v1520 = vunpack.c.l.b16 %v1424
        %v1521 = vunpack.c.l.b16 %v1425
        %v1522 = vunpack.c.l.b16 %v1426
        %v1523 = vpack.c.b16 %v1520, %v1519
        %v1524 = vpack.c.b16 %v1522, %v1521
        %1527 = vmatprep.subr.bf16.mxu0 0
        %1528 = vmatpush1.bf16.msra.mxu0 0
        %1529 = vmatprep.subr.bf16.mxu0 0
        %1530 = vmatpush1.bf16.msra.mxu0 0
        %1531 = vmatprep.subr.bf16.mxu0 0
        %1532 = vmatpush1.bf16.msra.mxu0 0
        %1533 = vmatprep.subr.bf16.mxu0 0
        %1534 = vmatpush1.bf16.msra.mxu0 0
        %1535 = vmatprep.subr.bf16.mxu0 0
        %1536 = vmatpush1.bf16.msra.mxu0 0
        %1537 = vmatprep.subr.bf16.mxu0 0
        %1538 = vmatpush1.bf16.msra.mxu0 0
        %1539 = vmatprep.subr.bf16.mxu0 0
        %1540 = vmatpush1.bf16.msra.mxu0 %v1524
        %1541 = vmatprep.subr.bf16.mxu0 0
        %1542 = vmatpush1.bf16.msra.mxu0 %v1523
        %1543 = vmatprep.subr.bf16.mxu0 0
        %1544 = vmatpush2.bf16.msra.mxu0 0
        %1545 = vmatprep.subr.bf16.mxu0 0
        %1546 = vmatpush2.bf16.msra.mxu0 0
        %1547 = vmatprep.subr.bf16.mxu0 0
        %1548 = vmatpush2.bf16.msra.mxu0 0
        %1549 = vmatprep.subr.bf16.mxu0 0
        %1550 = vmatpush2.bf16.msra.mxu0 0
        %1551 = vmatprep.subr.bf16.mxu0 0
        %1552 = vmatpush2.bf16.msra.mxu0 0
        %1553 = vmatprep.subr.bf16.mxu0 0
        %1554 = vmatpush2.bf16.msra.mxu0 0
        %1555 = vmatprep.subr.bf16.mxu0 0
        %1556 = vmatpush2.bf16.msra.mxu0 0
        %1557 = vmatprep.subr.bf16.mxu0 0
        %1558 = vmatpush2.bf16.msra.mxu0 0
        %1559 = vmatprep.mubr.bf16.mxu0 0
        %1560 = vmatmul.mubr.bf16.gmra.mxu0 %v969
        %v1561 = vpop.f32.mrf.mxu0
        %v1562 = vadd.f32 %v1450, %v1561
        %v1563 = vpop.f32.mrf.mxu0
        %v1564 = vpop.f32.mrf.mxu0
        %v1565 = vpop.f32.mrf.mxu0
        %1566 = vdwg.mxu0
        %v1571 = vunpack.c.l.b16 %v1427
        %v1572 = vunpack.c.l.b16 %v1428
        %v1573 = vunpack.c.l.b16 %v1429
        %v1574 = vunpack.c.l.b16 %v1430
        %v1575 = vpack.c.b16 %v1572, %v1571
        %v1576 = vpack.c.b16 %v1574, %v1573
        %1579 = vmatprep.subr.bf16.mxu0 0
        %1580 = vmatpush1.bf16.msra.mxu0 0
        %1581 = vmatprep.subr.bf16.mxu0 0
        %1582 = vmatpush1.bf16.msra.mxu0 0
        %1583 = vmatprep.subr.bf16.mxu0 0
        %1584 = vmatpush1.bf16.msra.mxu0 0
        %1585 = vmatprep.subr.bf16.mxu0 0
        %1586 = vmatpush1.bf16.msra.mxu0 0
        %1587 = vmatprep.subr.bf16.mxu0 0
        %1588 = vmatpush1.bf16.msra.mxu0 0
        %1589 = vmatprep.subr.bf16.mxu0 0
        %1590 = vmatpush1.bf16.msra.mxu0 0
        %1591 = vmatprep.subr.bf16.mxu0 0
        %1592 = vmatpush1.bf16.msra.mxu0 %v1576
        %1593 = vmatprep.subr.bf16.mxu0 0
        %1594 = vmatpush1.bf16.msra.mxu0 %v1575
        %1595 = vmatprep.subr.bf16.mxu0 0
        %1596 = vmatpush2.bf16.msra.mxu0 0
        %1597 = vmatprep.subr.bf16.mxu0 0
        %1598 = vmatpush2.bf16.msra.mxu0 0
        %1599 = vmatprep.subr.bf16.mxu0 0
        %1600 = vmatpush2.bf16.msra.mxu0 0
        %1601 = vmatprep.subr.bf16.mxu0 0
        %1602 = vmatpush2.bf16.msra.mxu0 0
        %1603 = vmatprep.subr.bf16.mxu0 0
        %1604 = vmatpush2.bf16.msra.mxu0 0
        %1605 = vmatprep.subr.bf16.mxu0 0
        %1606 = vmatpush2.bf16.msra.mxu0 0
        %1607 = vmatprep.subr.bf16.mxu0 0
        %1608 = vmatpush2.bf16.msra.mxu0 0
        %1609 = vmatprep.subr.bf16.mxu0 0
        %1610 = vmatpush2.bf16.msra.mxu0 0
        %1611 = vmatprep.mubr.bf16.mxu0 0
        %1612 = vmatmul.mubr.bf16.gmra.mxu0 %v969
        %v1613 = vpop.f32.mrf.mxu0
        %v1614 = vadd.f32 %v1454, %v1613
        %v1615 = vpop.f32.mrf.mxu0
        %v1616 = vpop.f32.mrf.mxu0
        %v1617 = vpop.f32.mrf.mxu0
        %1618 = vdwg.mxu0
        %v1623 = vunpack.c.l.b16 %v1431
        %v1624 = vunpack.c.l.b16 %v1432
        %v1625 = vunpack.c.l.b16 %v1433
        %v1626 = vunpack.c.l.b16 %v1434
        %v1627 = vpack.c.b16 %v1624, %v1623
        %v1628 = vpack.c.b16 %v1626, %v1625
        %1631 = vmatprep.subr.bf16.mxu0 0
        %1632 = vmatpush1.bf16.msra.mxu0 0
        %1633 = vmatprep.subr.bf16.mxu0 0
        %1634 = vmatpush1.bf16.msra.mxu0 0
        %1635 = vmatprep.subr.bf16.mxu0 0
        %1636 = vmatpush1.bf16.msra.mxu0 0
        %1637 = vmatprep.subr.bf16.mxu0 0
        %1638 = vmatpush1.bf16.msra.mxu0 0
        %1639 = vmatprep.subr.bf16.mxu0 0
        %1640 = vmatpush1.bf16.msra.mxu0 0
        %1641 = vmatprep.subr.bf16.mxu0 0
        %1642 = vmatpush1.bf16.msra.mxu0 0
        %1643 = vmatprep.subr.bf16.mxu0 0
        %1644 = vmatpush1.bf16.msra.mxu0 %v1628
        %1645 = vmatprep.subr.bf16.mxu0 0
        %1646 = vmatpush1.bf16.msra.mxu0 %v1627
        %1647 = vmatprep.subr.bf16.mxu0 0
        %1648 = vmatpush2.bf16.msra.mxu0 0
        %1649 = vmatprep.subr.bf16.mxu0 0
        %1650 = vmatpush2.bf16.msra.mxu0 0
        %1651 = vmatprep.subr.bf16.mxu0 0
        %1652 = vmatpush2.bf16.msra.mxu0 0
        %1653 = vmatprep.subr.bf16.mxu0 0
        %1654 = vmatpush2.bf16.msra.mxu0 0
        %1655 = vmatprep.subr.bf16.mxu0 0
        %1656 = vmatpush2.bf16.msra.mxu0 0
        %1657 = vmatprep.subr.bf16.mxu0 0
        %1658 = vmatpush2.bf16.msra.mxu0 0
        %1659 = vmatprep.subr.bf16.mxu0 0
        %1660 = vmatpush2.bf16.msra.mxu0 0
        %1661 = vmatprep.subr.bf16.mxu0 0
        %1662 = vmatpush2.bf16.msra.mxu0 0
        %1663 = vmatprep.mubr.bf16.mxu0 0
        %1664 = vmatmul.mubr.bf16.gmra.mxu0 %v969
        %v1665 = vpop.f32.mrf.mxu0
        %v1666 = vadd.f32 %v1458, %v1665
        %v1667 = vpop.f32.mrf.mxu0
        %v1668 = vpop.f32.mrf.mxu0
        %v1669 = vpop.f32.mrf.mxu0
        %1670 = vdwg.mxu0
        %v1671 = vpack.c.bf16 %v1006, %v1006
        %v1672 = vpack.c.bf16 %v1058, %v1058
        %v1673 = vpack.c.bf16 %v1110, %v1110
        %v1674 = vpack.c.bf16 %v1162, %v1162
        %v1675 = vpack.c.bf16 %v1258, %v1258
        %v1676 = vpack.c.bf16 %v1310, %v1310
        %v1677 = vpack.c.bf16 %v1362, %v1362
        %v1678 = vpack.c.bf16 %v1414, %v1414
        %vm1679 = vcmask 64512
        %v1681 = vsel %vm1679, %v1671, 0
        %v1684 = vsel %vm1679, %v1675, 0
        %1686 = vmatprep.subr.bf16.mxu0 0
        %1687 = vmatpush1.bf16.xpose.msra.mxu0 0
        %1688 = vmatprep.subr.bf16.mxu0 0
        %1689 = vmatpush1.bf16.xpose.msra.mxu0 0
        %1690 = vmatprep.subr.bf16.mxu0 0
        %1691 = vmatpush1.bf16.xpose.msra.mxu0 0
        %1692 = vmatprep.subr.bf16.mxu0 0
        %1693 = vmatpush1.bf16.xpose.msra.mxu0 0
        %1694 = vmatprep.subr.bf16.mxu0 0
        %1695 = vmatpush1.bf16.xpose.msra.mxu0 0
        %1696 = vmatprep.subr.bf16.mxu0 0
        %1697 = vmatpush1.bf16.xpose.msra.mxu0 0
        %1698 = vmatprep.subr.bf16.mxu0 0
        %1699 = vmatpush1.bf16.xpose.msra.mxu0 0
        %1700 = vmatprep.subr.bf16.mxu0 0
        %1701 = vmatpush1.bf16.xpose.msra.mxu0 %v1684
        %1702 = vmatprep.subr.bf16.mxu0 0
        %1703 = vmatpush2.bf16.xpose.msra.mxu0 0
        %1704 = vmatprep.subr.bf16.mxu0 0
        %1705 = vmatpush2.bf16.xpose.msra.mxu0 0
        %1706 = vmatprep.subr.bf16.mxu0 0
        %1707 = vmatpush2.bf16.xpose.msra.mxu0 0
        %1708 = vmatprep.subr.bf16.mxu0 0
        %1709 = vmatpush2.bf16.xpose.msra.mxu0 0
        %1710 = vmatprep.subr.bf16.mxu0 0
        %1711 = vmatpush2.bf16.xpose.msra.mxu0 0
        %1712 = vmatprep.subr.bf16.mxu0 0
        %1713 = vmatpush2.bf16.xpose.msra.mxu0 0
        %1714 = vmatprep.subr.bf16.mxu0 0
        %1715 = vmatpush2.bf16.xpose.msra.mxu0 0
        %1716 = vmatprep.subr.bf16.mxu0 0
        %1717 = vmatpush2.bf16.xpose.msra.mxu0 0
        %1718 = vmatprep.mubr.bf16.mxu0 0
        %1719 = vmatmul.mubr.bf16.gmra.mxu0 %v1681
        %v1720 = vpop.f32.mrf.mxu0
        %v1721 = vadd.f32 0.0, %v1720
        %v1722 = vpop.f32.mrf.mxu0
        %v1723 = vpop.f32.mrf.mxu0
        %v1724 = vpop.f32.mrf.mxu0
        %1725 = vdwg.mxu0
        %v1727 = vsel %vm1679, %v1672, 0
        %v1730 = vsel %vm1679, %v1676, 0
        %1732 = vmatprep.subr.bf16.mxu0 0
        %1733 = vmatpush1.bf16.xpose.msra.mxu0 0
        %1734 = vmatprep.subr.bf16.mxu0 0
        %1735 = vmatpush1.bf16.xpose.msra.mxu0 0
        %1736 = vmatprep.subr.bf16.mxu0 0
        %1737 = vmatpush1.bf16.xpose.msra.mxu0 0
        %1738 = vmatprep.subr.bf16.mxu0 0
        %1739 = vmatpush1.bf16.xpose.msra.mxu0 0
        %1740 = vmatprep.subr.bf16.mxu0 0
        %1741 = vmatpush1.bf16.xpose.msra.mxu0 0
        %1742 = vmatprep.subr.bf16.mxu0 0
        %1743 = vmatpush1.bf16.xpose.msra.mxu0 0
        %1744 = vmatprep.subr.bf16.mxu0 0
        %1745 = vmatpush1.bf16.xpose.msra.mxu0 0
        %1746 = vmatprep.subr.bf16.mxu0 0
        %1747 = vmatpush1.bf16.xpose.msra.mxu0 %v1730
        %1748 = vmatprep.subr.bf16.mxu0 0
        %1749 = vmatpush2.bf16.xpose.msra.mxu0 0
        %1750 = vmatprep.subr.bf16.mxu0 0
        %1751 = vmatpush2.bf16.xpose.msra.mxu0 0
        %1752 = vmatprep.subr.bf16.mxu0 0
        %1753 = vmatpush2.bf16.xpose.msra.mxu0 0
        %1754 = vmatprep.subr.bf16.mxu0 0
        %1755 = vmatpush2.bf16.xpose.msra.mxu0 0
        %1756 = vmatprep.subr.bf16.mxu0 0
        %1757 = vmatpush2.bf16.xpose.msra.mxu0 0
        %1758 = vmatprep.subr.bf16.mxu0 0
        %1759 = vmatpush2.bf16.xpose.msra.mxu0 0
        %1760 = vmatprep.subr.bf16.mxu0 0
        %1761 = vmatpush2.bf16.xpose.msra.mxu0 0
        %1762 = vmatprep.subr.bf16.mxu0 0
        %1763 = vmatpush2.bf16.xpose.msra.mxu0 0
        %1764 = vmatprep.mubr.bf16.mxu0 0
        %1765 = vmatmul.mubr.bf16.gmra.mxu0 %v1727
        %v1766 = vpop.f32.mrf.mxu0
        %v1767 = vadd.f32 0.0, %v1766
        %v1768 = vpop.f32.mrf.mxu0
        %v1769 = vpop.f32.mrf.mxu0
        %v1770 = vpop.f32.mrf.mxu0
        %1771 = vdwg.mxu0
        %v1773 = vsel %vm1679, %v1673, 0
        %v1776 = vsel %vm1679, %v1677, 0
        %1778 = vmatprep.subr.bf16.mxu0 0
        %1779 = vmatpush1.bf16.xpose.msra.mxu0 0
        %1780 = vmatprep.subr.bf16.mxu0 0
        %1781 = vmatpush1.bf16.xpose.msra.mxu0 0
        %1782 = vmatprep.subr.bf16.mxu0 0
        %1783 = vmatpush1.bf16.xpose.msra.mxu0 0
        %1784 = vmatprep.subr.bf16.mxu0 0
        %1785 = vmatpush1.bf16.xpose.msra.mxu0 0
        %1786 = vmatprep.subr.bf16.mxu0 0
        %1787 = vmatpush1.bf16.xpose.msra.mxu0 0
        %1788 = vmatprep.subr.bf16.mxu0 0
        %1789 = vmatpush1.bf16.xpose.msra.mxu0 0
        %1790 = vmatprep.subr.bf16.mxu0 0
        %1791 = vmatpush1.bf16.xpose.msra.mxu0 0
        %1792 = vmatprep.subr.bf16.mxu0 0
        %1793 = vmatpush1.bf16.xpose.msra.mxu0 %v1776
        %1794 = vmatprep.subr.bf16.mxu0 0
        %1795 = vmatpush2.bf16.xpose.msra.mxu0 0
        %1796 = vmatprep.subr.bf16.mxu0 0
        %1797 = vmatpush2.bf16.xpose.msra.mxu0 0
        %1798 = vmatprep.subr.bf16.mxu0 0
        %1799 = vmatpush2.bf16.xpose.msra.mxu0 0
        %1800 = vmatprep.subr.bf16.mxu0 0
        %1801 = vmatpush2.bf16.xpose.msra.mxu0 0
        %1802 = vmatprep.subr.bf16.mxu0 0
        %1803 = vmatpush2.bf16.xpose.msra.mxu0 0
        %1804 = vmatprep.subr.bf16.mxu0 0
        %1805 = vmatpush2.bf16.xpose.msra.mxu0 0
        %1806 = vmatprep.subr.bf16.mxu0 0
        %1807 = vmatpush2.bf16.xpose.msra.mxu0 0
        %1808 = vmatprep.subr.bf16.mxu0 0
        %1809 = vmatpush2.bf16.xpose.msra.mxu0 0
        %1810 = vmatprep.mubr.bf16.mxu0 0
        %1811 = vmatmul.mubr.bf16.gmra.mxu0 %v1773
        %v1812 = vpop.f32.mrf.mxu0
        %v1813 = vadd.f32 0.0, %v1812
        %v1814 = vpop.f32.mrf.mxu0
        %v1815 = vpop.f32.mrf.mxu0
        %v1816 = vpop.f32.mrf.mxu0
        %1817 = vdwg.mxu0
        %v1819 = vsel %vm1679, %v1674, 0
        %v1822 = vsel %vm1679, %v1678, 0
        %1824 = vmatprep.subr.bf16.mxu0 0
        %1825 = vmatpush1.bf16.xpose.msra.mxu0 0
        %1826 = vmatprep.subr.bf16.mxu0 0
        %1827 = vmatpush1.bf16.xpose.msra.mxu0 0
        %1828 = vmatprep.subr.bf16.mxu0 0
        %1829 = vmatpush1.bf16.xpose.msra.mxu0 0
        %1830 = vmatprep.subr.bf16.mxu0 0
        %1831 = vmatpush1.bf16.xpose.msra.mxu0 0
        %1832 = vmatprep.subr.bf16.mxu0 0
        %1833 = vmatpush1.bf16.xpose.msra.mxu0 0
        %1834 = vmatprep.subr.bf16.mxu0 0
        %1835 = vmatpush1.bf16.xpose.msra.mxu0 0
        %1836 = vmatprep.subr.bf16.mxu0 0
        %1837 = vmatpush1.bf16.xpose.msra.mxu0 0
        %1838 = vmatprep.subr.bf16.mxu0 0
        %1839 = vmatpush1.bf16.xpose.msra.mxu0 %v1822
        %1840 = vmatprep.subr.bf16.mxu0 0
        %1841 = vmatpush2.bf16.xpose.msra.mxu0 0
        %1842 = vmatprep.subr.bf16.mxu0 0
        %1843 = vmatpush2.bf16.xpose.msra.mxu0 0
        %1844 = vmatprep.subr.bf16.mxu0 0
        %1845 = vmatpush2.bf16.xpose.msra.mxu0 0
        %1846 = vmatprep.subr.bf16.mxu0 0
        %1847 = vmatpush2.bf16.xpose.msra.mxu0 0
        %1848 = vmatprep.subr.bf16.mxu0 0
        %1849 = vmatpush2.bf16.xpose.msra.mxu0 0
        %1850 = vmatprep.subr.bf16.mxu0 0
        %1851 = vmatpush2.bf16.xpose.msra.mxu0 0
        %1852 = vmatprep.subr.bf16.mxu0 0
        %1853 = vmatpush2.bf16.xpose.msra.mxu0 0
        %1854 = vmatprep.subr.bf16.mxu0 0
        %1855 = vmatpush2.bf16.xpose.msra.mxu0 0
        %1856 = vmatprep.mubr.bf16.mxu0 0
        %1857 = vmatmul.mubr.bf16.gmra.mxu0 %v1819
        %v1858 = vpop.f32.mrf.mxu0
        %v1859 = vadd.f32 0.0, %v1858
        %v1860 = vpop.f32.mrf.mxu0
        %v1861 = vpop.f32.mrf.mxu0
        %v1862 = vpop.f32.mrf.mxu0
        %1863 = vdwg.mxu0
        %v1864 = vmul.f32 %v1721, 0.35355338
        %v1865 = vmul.f32 %v1767, 0.35355338
        %v1866 = vmul.f32 %v1813, 0.35355338
        %v1867 = vmul.f32 %v1859, 0.35355338
        %v1869 = vlaneseq
        %v1870 = vshrl.u32 %v1869, 7
        %v1871 = vsub.s32 0, %v1870
        %v1872 = vrot.slane %v879, %v1871
        %v1874 = vadd.f32 %v1864, %v1872
        %v1875 = vadd.f32 %v1865, %v1872
        %v1876 = vadd.f32 %v1866, %v1872
        %v1877 = vadd.f32 %v1867, %v1872
        %v1878 = vsel %vm1679, %v1874, -inf
        %1879 = vmax.xlane.f32.xlu0 %v1878
        %v1880 = vpop.xlane.xlu0 %1879
        %v1881 = vsel %vm1679, %v1875, -inf
        %1882 = vmax.xlane.f32.xlu0 %v1881
        %v1883 = vpop.xlane.xlu0 %1882
        %v1884 = vsel %vm1679, %v1876, -inf
        %1885 = vmax.xlane.f32.xlu0 %v1884
        %v1886 = vpop.xlane.xlu0 %1885
        %v1887 = vsel %vm1679, %v1877, -inf
        %1888 = vmax.xlane.f32.xlu0 %v1887
        %v1889 = vpop.xlane.xlu0 %1888
        %v1890 = vsub.f32 %v1874, %v1880
        %v1891 = vsub.f32 %v1875, %v1883
        %v1892 = vsub.f32 %v1876, %v1886
        %v1893 = vsub.f32 %v1877, %v1889
        %v1894 = vmul.f32 %v1890, 1.442695
        %v1895 = vpow.pop %v1894
        %v1896 = vmul.f32 %v1891, 1.442695
        %v1897 = vpow.pop %v1896
        %v1898 = vmul.f32 %v1892, 1.442695
        %v1899 = vpow.pop %v1898
        %v1900 = vmul.f32 %v1893, 1.442695
        %v1901 = vpow.pop %v1900
        %v1902 = vsel %vm1679, %v1895, 0.0
        %1903 = vadd.xlane.f32.xlu0 %v1902
        %v1904 = vpop.xlane.xlu0 %1903
        %v1905 = vsel %vm1679, %v1897, 0.0
        %1906 = vadd.xlane.f32.xlu0 %v1905
        %v1907 = vpop.xlane.xlu0 %1906
        %v1908 = vsel %vm1679, %v1899, 0.0
        %1909 = vadd.xlane.f32.xlu0 %v1908
        %v1910 = vpop.xlane.xlu0 %1909
        %v1911 = vsel %vm1679, %v1901, 0.0
        %1912 = vadd.xlane.f32.xlu0 %v1911
        %v1913 = vpop.xlane.xlu0 %1912
        %v1914 = vrcp.pop %v1904
        %v1915 = vrcp.pop %v1907
        %v1916 = vrcp.pop %v1910
        %v1917 = vrcp.pop %v1913
        %v1918 = vmul.f32 %v1895, %v1914
        %v1919 = vmul.f32 %v1897, %v1915
        %v1920 = vmul.f32 %v1899, %v1916
        %v1921 = vmul.f32 %v1901, %v1917
        %v1922 = vpack.c.bf16 %v1918, %v1918
        %v1923 = vpack.c.bf16 %v1919, %v1919
        %v1924 = vpack.c.bf16 %v1920, %v1920
        %v1925 = vpack.c.bf16 %v1921, %v1921
        %v1926 = vpack.c.bf16 %v1510, %v1510
        %v1927 = vpack.c.bf16 %v1562, %v1562
        %v1928 = vpack.c.bf16 %v1614, %v1614
        %v1929 = vpack.c.bf16 %v1666, %v1666
        %v1931 = vsel %vm1679, %v1922, 0
        %vm1933 = vcmask 1043456
        %v1935 = vsel %vm1933, %v1926, 0
        %1937 = vmatprep.subr.bf16.mxu0 0
        %1938 = vmatpush1.bf16.msra.mxu0 0
        %1939 = vmatprep.subr.bf16.mxu0 0
        %1940 = vmatpush1.bf16.msra.mxu0 0
        %1941 = vmatprep.subr.bf16.mxu0 0
        %1942 = vmatpush1.bf16.msra.mxu0 0
        %1943 = vmatprep.subr.bf16.mxu0 0
        %1944 = vmatpush1.bf16.msra.mxu0 0
        %1945 = vmatprep.subr.bf16.mxu0 0
        %1946 = vmatpush1.bf16.msra.mxu0 0
        %1947 = vmatprep.subr.bf16.mxu0 0
        %1948 = vmatpush1.bf16.msra.mxu0 0
        %1949 = vmatprep.subr.bf16.mxu0 0
        %1950 = vmatpush1.bf16.msra.mxu0 0
        %1951 = vmatprep.subr.bf16.mxu0 0
        %1952 = vmatpush1.bf16.msra.mxu0 %v1935
        %1953 = vmatprep.subr.bf16.mxu0 0
        %1954 = vmatpush2.bf16.msra.mxu0 0
        %1955 = vmatprep.subr.bf16.mxu0 0
        %1956 = vmatpush2.bf16.msra.mxu0 0
        %1957 = vmatprep.subr.bf16.mxu0 0
        %1958 = vmatpush2.bf16.msra.mxu0 0
        %1959 = vmatprep.subr.bf16.mxu0 0
        %1960 = vmatpush2.bf16.msra.mxu0 0
        %1961 = vmatprep.subr.bf16.mxu0 0
        %1962 = vmatpush2.bf16.msra.mxu0 0
        %1963 = vmatprep.subr.bf16.mxu0 0
        %1964 = vmatpush2.bf16.msra.mxu0 0
        %1965 = vmatprep.subr.bf16.mxu0 0
        %1966 = vmatpush2.bf16.msra.mxu0 0
        %1967 = vmatprep.subr.bf16.mxu0 0
        %1968 = vmatpush2.bf16.msra.mxu0 0
        %1969 = vmatprep.mubr.bf16.mxu0 0
        %1970 = vmatmul.mubr.bf16.gmra.mxu0 %v1931
        %v1971 = vpop.f32.mrf.mxu0
        %v1972 = vadd.f32 0.0, %v1971
        %v1973 = vpop.f32.mrf.mxu0
        %v1974 = vpop.f32.mrf.mxu0
        %v1975 = vpop.f32.mrf.mxu0
        %1976 = vdwg.mxu0
        %v1978 = vsel %vm1679, %v1923, 0
        %v1981 = vsel %vm1933, %v1927, 0
        %1983 = vmatprep.subr.bf16.mxu0 0
        %1984 = vmatpush1.bf16.msra.mxu0 0
        %1985 = vmatprep.subr.bf16.mxu0 0
        %1986 = vmatpush1.bf16.msra.mxu0 0
        %1987 = vmatprep.subr.bf16.mxu0 0
        %1988 = vmatpush1.bf16.msra.mxu0 0
        %1989 = vmatprep.subr.bf16.mxu0 0
        %1990 = vmatpush1.bf16.msra.mxu0 0
        %1991 = vmatprep.subr.bf16.mxu0 0
        %1992 = vmatpush1.bf16.msra.mxu0 0
        %1993 = vmatprep.subr.bf16.mxu0 0
        %1994 = vmatpush1.bf16.msra.mxu0 0
        %1995 = vmatprep.subr.bf16.mxu0 0
        %1996 = vmatpush1.bf16.msra.mxu0 0
        %1997 = vmatprep.subr.bf16.mxu0 0
        %1998 = vmatpush1.bf16.msra.mxu0 %v1981
        %1999 = vmatprep.subr.bf16.mxu0 0
        %2000 = vmatpush2.bf16.msra.mxu0 0
        %2001 = vmatprep.subr.bf16.mxu0 0
        %2002 = vmatpush2.bf16.msra.mxu0 0
        %2003 = vmatprep.subr.bf16.mxu0 0
        %2004 = vmatpush2.bf16.msra.mxu0 0
        %2005 = vmatprep.subr.bf16.mxu0 0
        %2006 = vmatpush2.bf16.msra.mxu0 0
        %2007 = vmatprep.subr.bf16.mxu0 0
        %2008 = vmatpush2.bf16.msra.mxu0 0
        %2009 = vmatprep.subr.bf16.mxu0 0
        %2010 = vmatpush2.bf16.msra.mxu0 0
        %2011 = vmatprep.subr.bf16.mxu0 0
        %2012 = vmatpush2.bf16.msra.mxu0 0
        %2013 = vmatprep.subr.bf16.mxu0 0
        %2014 = vmatpush2.bf16.msra.mxu0 0
        %2015 = vmatprep.mubr.bf16.mxu0 0
        %2016 = vmatmul.mubr.bf16.gmra.mxu0 %v1978
        %v2017 = vpop.f32.mrf.mxu0
        %v2018 = vadd.f32 0.0, %v2017
        %v2019 = vpop.f32.mrf.mxu0
        %v2020 = vpop.f32.mrf.mxu0
        %v2021 = vpop.f32.mrf.mxu0
        %2022 = vdwg.mxu0
        %v2024 = vsel %vm1679, %v1924, 0
        %v2027 = vsel %vm1933, %v1928, 0
        %2029 = vmatprep.subr.bf16.mxu0 0
        %2030 = vmatpush1.bf16.msra.mxu0 0
        %2031 = vmatprep.subr.bf16.mxu0 0
        %2032 = vmatpush1.bf16.msra.mxu0 0
        %2033 = vmatprep.subr.bf16.mxu0 0
        %2034 = vmatpush1.bf16.msra.mxu0 0
        %2035 = vmatprep.subr.bf16.mxu0 0
        %2036 = vmatpush1.bf16.msra.mxu0 0
        %2037 = vmatprep.subr.bf16.mxu0 0
        %2038 = vmatpush1.bf16.msra.mxu0 0
        %2039 = vmatprep.subr.bf16.mxu0 0
        %2040 = vmatpush1.bf16.msra.mxu0 0
        %2041 = vmatprep.subr.bf16.mxu0 0
        %2042 = vmatpush1.bf16.msra.mxu0 0
        %2043 = vmatprep.subr.bf16.mxu0 0
        %2044 = vmatpush1.bf16.msra.mxu0 %v2027
        %2045 = vmatprep.subr.bf16.mxu0 0
        %2046 = vmatpush2.bf16.msra.mxu0 0
        %2047 = vmatprep.subr.bf16.mxu0 0
        %2048 = vmatpush2.bf16.msra.mxu0 0
        %2049 = vmatprep.subr.bf16.mxu0 0
        %2050 = vmatpush2.bf16.msra.mxu0 0
        %2051 = vmatprep.subr.bf16.mxu0 0
        %2052 = vmatpush2.bf16.msra.mxu0 0
        %2053 = vmatprep.subr.bf16.mxu0 0
        %2054 = vmatpush2.bf16.msra.mxu0 0
        %2055 = vmatprep.subr.bf16.mxu0 0
        %2056 = vmatpush2.bf16.msra.mxu0 0
        %2057 = vmatprep.subr.bf16.mxu0 0
        %2058 = vmatpush2.bf16.msra.mxu0 0
        %2059 = vmatprep.subr.bf16.mxu0 0
        %2060 = vmatpush2.bf16.msra.mxu0 0
        %2061 = vmatprep.mubr.bf16.mxu0 0
        %2062 = vmatmul.mubr.bf16.gmra.mxu0 %v2024
        %v2063 = vpop.f32.mrf.mxu0
        %v2064 = vadd.f32 0.0, %v2063
        %v2065 = vpop.f32.mrf.mxu0
        %v2066 = vpop.f32.mrf.mxu0
        %v2067 = vpop.f32.mrf.mxu0
        %2068 = vdwg.mxu0
        %v2070 = vsel %vm1679, %v1925, 0
        %v2073 = vsel %vm1933, %v1929, 0
        %2075 = vmatprep.subr.bf16.mxu0 0
        %2076 = vmatpush1.bf16.msra.mxu0 0
        %2077 = vmatprep.subr.bf16.mxu0 0
        %2078 = vmatpush1.bf16.msra.mxu0 0
        %2079 = vmatprep.subr.bf16.mxu0 0
        %2080 = vmatpush1.bf16.msra.mxu0 0
        %2081 = vmatprep.subr.bf16.mxu0 0
        %2082 = vmatpush1.bf16.msra.mxu0 0
        %2083 = vmatprep.subr.bf16.mxu0 0
        %2084 = vmatpush1.bf16.msra.mxu0 0
        %2085 = vmatprep.subr.bf16.mxu0 0
        %2086 = vmatpush1.bf16.msra.mxu0 0
        %2087 = vmatprep.subr.bf16.mxu0 0
        %2088 = vmatpush1.bf16.msra.mxu0 0
        %2089 = vmatprep.subr.bf16.mxu0 0
        %2090 = vmatpush1.bf16.msra.mxu0 %v2073
        %2091 = vmatprep.subr.bf16.mxu0 0
        %2092 = vmatpush2.bf16.msra.mxu0 0
        %2093 = vmatprep.subr.bf16.mxu0 0
        %2094 = vmatpush2.bf16.msra.mxu0 0
        %2095 = vmatprep.subr.bf16.mxu0 0
        %2096 = vmatpush2.bf16.msra.mxu0 0
        %2097 = vmatprep.subr.bf16.mxu0 0
        %2098 = vmatpush2.bf16.msra.mxu0 0
        %2099 = vmatprep.subr.bf16.mxu0 0
        %2100 = vmatpush2.bf16.msra.mxu0 0
        %2101 = vmatprep.subr.bf16.mxu0 0
        %2102 = vmatpush2.bf16.msra.mxu0 0
        %2103 = vmatprep.subr.bf16.mxu0 0
        %2104 = vmatpush2.bf16.msra.mxu0 0
        %2105 = vmatprep.subr.bf16.mxu0 0
        %2106 = vmatpush2.bf16.msra.mxu0 0
        %2107 = vmatprep.mubr.bf16.mxu0 0
        %2108 = vmatmul.mubr.bf16.gmra.mxu0 %v2070
        %v2109 = vpop.f32.mrf.mxu0
        %v2110 = vadd.f32 0.0, %v2109
        %v2111 = vpop.f32.mrf.mxu0
        %v2112 = vpop.f32.mrf.mxu0
        %v2113 = vpop.f32.mrf.mxu0
        %2114 = vdwg.mxu0
        %v2115 = vpack.c.bf16 %v1972, %v1972
        %v2116 = vpack.c.bf16 %v2018, %v2018
        %v2117 = vpack.c.bf16 %v2064, %v2064
        %v2118 = vpack.c.bf16 %v2110, %v2110
        %v2119 = vld [vmem:[%s845] sm:$0xf]
        %v2120 = vld [vmem:[%s845 + $0x4] sm:$0xf]
        %v2121 = vld [vmem:[%s845 + $0x8] sm:$0xf]
        %v2122 = vld [vmem:[%s845 + $0xc] sm:$0xf]
        %v2124 = vsel %vm1679, %v2115, 0
        %v2127 = vsel %vm1933, %v2119, 0
        %2129 = vmatprep.subr.bf16.mxu0 0
        %2130 = vmatpush1.bf16.msra.mxu0 0
        %2131 = vmatprep.subr.bf16.mxu0 0
        %2132 = vmatpush1.bf16.msra.mxu0 0
        %2133 = vmatprep.subr.bf16.mxu0 0
        %2134 = vmatpush1.bf16.msra.mxu0 0
        %2135 = vmatprep.subr.bf16.mxu0 0
        %2136 = vmatpush1.bf16.msra.mxu0 0
        %2137 = vmatprep.subr.bf16.mxu0 0
        %2138 = vmatpush1.bf16.msra.mxu0 0
        %2139 = vmatprep.subr.bf16.mxu0 0
        %2140 = vmatpush1.bf16.msra.mxu0 0
        %2141 = vmatprep.subr.bf16.mxu0 0
        %2142 = vmatpush1.bf16.msra.mxu0 0
        %2143 = vmatprep.subr.bf16.mxu0 0
        %2144 = vmatpush1.bf16.msra.mxu0 %v2127
        %2145 = vmatprep.subr.bf16.mxu0 0
        %2146 = vmatpush2.bf16.msra.mxu0 0
        %2147 = vmatprep.subr.bf16.mxu0 0
        %2148 = vmatpush2.bf16.msra.mxu0 0
        %2149 = vmatprep.subr.bf16.mxu0 0
        %2150 = vmatpush2.bf16.msra.mxu0 0
        %2151 = vmatprep.subr.bf16.mxu0 0
        %2152 = vmatpush2.bf16.msra.mxu0 0
        %2153 = vmatprep.subr.bf16.mxu0 0
        %2154 = vmatpush2.bf16.msra.mxu0 0
        %2155 = vmatprep.subr.bf16.mxu0 0
        %2156 = vmatpush2.bf16.msra.mxu0 0
        %2157 = vmatprep.subr.bf16.mxu0 0
        %2158 = vmatpush2.bf16.msra.mxu0 0
        %2159 = vmatprep.subr.bf16.mxu0 0
        %2160 = vmatpush2.bf16.msra.mxu0 0
        %2161 = vmatprep.mubr.bf16.mxu0 0
        %2162 = vmatmul.mubr.bf16.gmra.mxu0 %v2124
        %v2163 = vpop.f32.mrf.mxu0
        %v2164 = vadd.f32 0.0, %v2163
        %v2165 = vpop.f32.mrf.mxu0
        %v2166 = vpop.f32.mrf.mxu0
        %v2167 = vpop.f32.mrf.mxu0
        %2168 = vdwg.mxu0
        %v2170 = vsel %vm1679, %v2116, 0
        %v2173 = vsel %vm1933, %v2120, 0
        %2175 = vmatprep.subr.bf16.mxu0 0
        %2176 = vmatpush1.bf16.msra.mxu0 0
        %2177 = vmatprep.subr.bf16.mxu0 0
        %2178 = vmatpush1.bf16.msra.mxu0 0
        %2179 = vmatprep.subr.bf16.mxu0 0
        %2180 = vmatpush1.bf16.msra.mxu0 0
        %2181 = vmatprep.subr.bf16.mxu0 0
        %2182 = vmatpush1.bf16.msra.mxu0 0
        %2183 = vmatprep.subr.bf16.mxu0 0
        %2184 = vmatpush1.bf16.msra.mxu0 0
        %2185 = vmatprep.subr.bf16.mxu0 0
        %2186 = vmatpush1.bf16.msra.mxu0 0
        %2187 = vmatprep.subr.bf16.mxu0 0
        %2188 = vmatpush1.bf16.msra.mxu0 0
        %2189 = vmatprep.subr.bf16.mxu0 0
        %2190 = vmatpush1.bf16.msra.mxu0 %v2173
        %2191 = vmatprep.subr.bf16.mxu0 0
        %2192 = vmatpush2.bf16.msra.mxu0 0
        %2193 = vmatprep.subr.bf16.mxu0 0
        %2194 = vmatpush2.bf16.msra.mxu0 0
        %2195 = vmatprep.subr.bf16.mxu0 0
        %2196 = vmatpush2.bf16.msra.mxu0 0
        %2197 = vmatprep.subr.bf16.mxu0 0
        %2198 = vmatpush2.bf16.msra.mxu0 0
        %2199 = vmatprep.subr.bf16.mxu0 0
        %2200 = vmatpush2.bf16.msra.mxu0 0
        %2201 = vmatprep.subr.bf16.mxu0 0
        %2202 = vmatpush2.bf16.msra.mxu0 0
        %2203 = vmatprep.subr.bf16.mxu0 0
        %2204 = vmatpush2.bf16.msra.mxu0 0
        %2205 = vmatprep.subr.bf16.mxu0 0
        %2206 = vmatpush2.bf16.msra.mxu0 0
        %2207 = vmatprep.mubr.bf16.mxu0 0
        %2208 = vmatmul.mubr.bf16.gmra.mxu0 %v2170
        %v2209 = vpop.f32.mrf.mxu0
        %v2210 = vadd.f32 0.0, %v2209
        %v2211 = vpop.f32.mrf.mxu0
        %v2212 = vpop.f32.mrf.mxu0
        %v2213 = vpop.f32.mrf.mxu0
        %2214 = vdwg.mxu0
        %v2216 = vsel %vm1679, %v2117, 0
        %v2219 = vsel %vm1933, %v2121, 0
        %2221 = vmatprep.subr.bf16.mxu0 0
        %2222 = vmatpush1.bf16.msra.mxu0 0
        %2223 = vmatprep.subr.bf16.mxu0 0
        %2224 = vmatpush1.bf16.msra.mxu0 0
        %2225 = vmatprep.subr.bf16.mxu0 0
        %2226 = vmatpush1.bf16.msra.mxu0 0
        %2227 = vmatprep.subr.bf16.mxu0 0
        %2228 = vmatpush1.bf16.msra.mxu0 0
        %2229 = vmatprep.subr.bf16.mxu0 0
        %2230 = vmatpush1.bf16.msra.mxu0 0
        %2231 = vmatprep.subr.bf16.mxu0 0
        %2232 = vmatpush1.bf16.msra.mxu0 0
        %2233 = vmatprep.subr.bf16.mxu0 0
        %2234 = vmatpush1.bf16.msra.mxu0 0
        %2235 = vmatprep.subr.bf16.mxu0 0
        %2236 = vmatpush1.bf16.msra.mxu0 %v2219
        %2237 = vmatprep.subr.bf16.mxu0 0
        %2238 = vmatpush2.bf16.msra.mxu0 0
        %2239 = vmatprep.subr.bf16.mxu0 0
        %2240 = vmatpush2.bf16.msra.mxu0 0
        %2241 = vmatprep.subr.bf16.mxu0 0
        %2242 = vmatpush2.bf16.msra.mxu0 0
        %2243 = vmatprep.subr.bf16.mxu0 0
        %2244 = vmatpush2.bf16.msra.mxu0 0
        %2245 = vmatprep.subr.bf16.mxu0 0
        %2246 = vmatpush2.bf16.msra.mxu0 0
        %2247 = vmatprep.subr.bf16.mxu0 0
        %2248 = vmatpush2.bf16.msra.mxu0 0
        %2249 = vmatprep.subr.bf16.mxu0 0
        %2250 = vmatpush2.bf16.msra.mxu0 0
        %2251 = vmatprep.subr.bf16.mxu0 0
        %2252 = vmatpush2.bf16.msra.mxu0 0
        %2253 = vmatprep.mubr.bf16.mxu0 0
        %2254 = vmatmul.mubr.bf16.gmra.mxu0 %v2216
        %v2255 = vpop.f32.mrf.mxu0
        %v2256 = vadd.f32 0.0, %v2255
        %v2257 = vpop.f32.mrf.mxu0
        %v2258 = vpop.f32.mrf.mxu0
        %v2259 = vpop.f32.mrf.mxu0
        %2260 = vdwg.mxu0
        %v2262 = vsel %vm1679, %v2118, 0
        %v2265 = vsel %vm1933, %v2122, 0
        %2267 = vmatprep.subr.bf16.mxu0 0
        %2268 = vmatpush1.bf16.msra.mxu0 0
        %2269 = vmatprep.subr.bf16.mxu0 0
        %2270 = vmatpush1.bf16.msra.mxu0 0
        %2271 = vmatprep.subr.bf16.mxu0 0
        %2272 = vmatpush1.bf16.msra.mxu0 0
        %2273 = vmatprep.subr.bf16.mxu0 0
        %2274 = vmatpush1.bf16.msra.mxu0 0
        %2275 = vmatprep.subr.bf16.mxu0 0
        %2276 = vmatpush1.bf16.msra.mxu0 0
        %2277 = vmatprep.subr.bf16.mxu0 0
        %2278 = vmatpush1.bf16.msra.mxu0 0
        %2279 = vmatprep.subr.bf16.mxu0 0
        %2280 = vmatpush1.bf16.msra.mxu0 0
        %2281 = vmatprep.subr.bf16.mxu0 0
        %2282 = vmatpush1.bf16.msra.mxu0 %v2265
        %2283 = vmatprep.subr.bf16.mxu0 0
        %2284 = vmatpush2.bf16.msra.mxu0 0
        %2285 = vmatprep.subr.bf16.mxu0 0
        %2286 = vmatpush2.bf16.msra.mxu0 0
        %2287 = vmatprep.subr.bf16.mxu0 0
        %2288 = vmatpush2.bf16.msra.mxu0 0
        %2289 = vmatprep.subr.bf16.mxu0 0
        %2290 = vmatpush2.bf16.msra.mxu0 0
        %2291 = vmatprep.subr.bf16.mxu0 0
        %2292 = vmatpush2.bf16.msra.mxu0 0
        %2293 = vmatprep.subr.bf16.mxu0 0
        %2294 = vmatpush2.bf16.msra.mxu0 0
        %2295 = vmatprep.subr.bf16.mxu0 0
        %2296 = vmatpush2.bf16.msra.mxu0 0
        %2297 = vmatprep.subr.bf16.mxu0 0
        %2298 = vmatpush2.bf16.msra.mxu0 0
        %2299 = vmatprep.mubr.bf16.mxu0 0
        %2300 = vmatmul.mubr.bf16.gmra.mxu0 %v2262
        %v2301 = vpop.f32.mrf.mxu0
        %v2302 = vadd.f32 0.0, %v2301
        %v2303 = vpop.f32.mrf.mxu0
        %v2304 = vpop.f32.mrf.mxu0
        %v2305 = vpop.f32.mrf.mxu0
        %2306 = vdwg.mxu0
        %v2307 = vadd.f32 %v2164, %v2210
        %v2308 = vadd.f32 %v2307, %v2256
        %v2309 = vadd.f32 %v2308, %v2302
        %v2310 = vld [vmem:[%s848] sm:$0x1]
        %v2312 = vlaneseq
        %v2313 = vshrl.u32 %v2312, 7
        %v2314 = vsub.s32 0, %v2313
        %v2315 = vrot.slane %v2310, %v2314
        %v2317 = vadd.f32 %v2309, %v2315
        %v2318 = vadd.f32 %v876, %v2317
        %v2319 = vsel %vm882, %v2318, 0.0
        %2320 = vadd.xlane.f32.xlu0 %v2319
        %v2321 = vpop.xlane.xlu0 %2320
        %v2322 = vmul.f32 %v2321, %v886
        %v2323 = vsub.f32 %v2318, %v2322
        %v2324 = vmul.f32 %v2323, %v2323
        %v2325 = vsel %vm882, %v2324, 0.0
        %2326 = vadd.xlane.f32.xlu0 %v2325
        %v2327 = vpop.xlane.xlu0 %2326
        %v2328 = vmul.f32 %v2327, %v886
        %v2329 = vadd.f32 %v2328, 1e-05
        %v2330 = vrsqrt.pop %v2329
        %v2331 = vmul.f32 %v2323, %v2330
        %v2332 = vmul.f32 %v2331, %v901
        %v2333 = vadd.f32 %v2332, %v908
        %v2334 = vpack.c.bf16 %v2333, %v2333
        %v2335 = vld [vmem:[%s853] sm:$0xf]
        %v2336 = vld [vmem:[%s853 + $0x4] sm:$0xf]
        %v2337 = vld [vmem:[%s853 + $0x8] sm:$0xf]
        %v2338 = vld [vmem:[%s853 + $0xc] sm:$0xf]
        %v2339 = vld [vmem:[%s856] sm:$0x1]
        %v2341 = vlaneseq
        %v2342 = vshrl.u32 %v2341, 7
        %v2343 = vsub.s32 0, %v2342
        %v2344 = vrot.slane %v2339, %v2343
        %v2350 = vunpack.c.l.b16 %v2335
        %v2351 = vunpack.c.l.b16 %v2336
        %v2352 = vunpack.c.l.b16 %v2337
        %v2353 = vunpack.c.l.b16 %v2338
        %v2354 = vpack.c.b16 %v2351, %v2350
        %v2355 = vpack.c.b16 %v2353, %v2352
        %v2359 = vsel %vm882, %v2334, 0
        %2361 = vmatprep.subr.bf16.mxu0 0
        %2362 = vmatpush1.bf16.msra.mxu0 0
        %2363 = vmatprep.subr.bf16.mxu0 0
        %2364 = vmatpush1.bf16.msra.mxu0 0
        %2365 = vmatprep.subr.bf16.mxu0 0
        %2366 = vmatpush1.bf16.msra.mxu0 0
        %2367 = vmatprep.subr.bf16.mxu0 0
        %2368 = vmatpush1.bf16.msra.mxu0 0
        %2369 = vmatprep.subr.bf16.mxu0 0
        %2370 = vmatpush1.bf16.msra.mxu0 0
        %2371 = vmatprep.subr.bf16.mxu0 0
        %2372 = vmatpush1.bf16.msra.mxu0 0
        %2373 = vmatprep.subr.bf16.mxu0 0
        %2374 = vmatpush1.bf16.msra.mxu0 %v2355
        %2375 = vmatprep.subr.bf16.mxu0 0
        %2376 = vmatpush1.bf16.msra.mxu0 %v2354
        %2377 = vmatprep.subr.bf16.mxu0 0
        %2378 = vmatpush2.bf16.msra.mxu0 0
        %2379 = vmatprep.subr.bf16.mxu0 0
        %2380 = vmatpush2.bf16.msra.mxu0 0
        %2381 = vmatprep.subr.bf16.mxu0 0
        %2382 = vmatpush2.bf16.msra.mxu0 0
        %2383 = vmatprep.subr.bf16.mxu0 0
        %2384 = vmatpush2.bf16.msra.mxu0 0
        %2385 = vmatprep.subr.bf16.mxu0 0
        %2386 = vmatpush2.bf16.msra.mxu0 0
        %2387 = vmatprep.subr.bf16.mxu0 0
        %2388 = vmatpush2.bf16.msra.mxu0 0
        %2389 = vmatprep.subr.bf16.mxu0 0
        %2390 = vmatpush2.bf16.msra.mxu0 0
        %2391 = vmatprep.subr.bf16.mxu0 0
        %2392 = vmatpush2.bf16.msra.mxu0 0
        %2393 = vmatprep.mubr.bf16.mxu0 0
        %2394 = vmatmul.mubr.bf16.gmra.mxu0 %v2359
        %v2395 = vpop.f32.mrf.mxu0
        %v2396 = vadd.f32 %v2344, %v2395
        %v2397 = vpop.f32.mrf.mxu0
        %v2398 = vpop.f32.mrf.mxu0
        %v2399 = vpop.f32.mrf.mxu0
        %2400 = vdwg.mxu0
        %v2401 = vmax.f32 %v2396, 0.0
        %v2402 = vpack.c.bf16 %v2401, %v2401
        %v2403 = vld [vmem:[%s861] sm:$0xf]
        %v2404 = vld [vmem:[%s861 + $0x4] sm:$0xf]
        %v2405 = vld [vmem:[%s861 + $0x8] sm:$0xf]
        %v2406 = vld [vmem:[%s861 + $0xc] sm:$0xf]
        %v2407 = vld [vmem:[%s861 + $0x10] sm:$0xf]
        %v2408 = vld [vmem:[%s861 + $0x14] sm:$0xf]
        %v2409 = vld [vmem:[%s861 + $0x18] sm:$0xf]
        %v2410 = vld [vmem:[%s861 + $0x1c] sm:$0xf]
        %v2411 = vld [vmem:[%s864] sm:$0x1]
        %v2413 = vlaneseq
        %v2414 = vshrl.u32 %v2413, 7
        %v2415 = vsub.s32 0, %v2414
        %v2416 = vrot.slane %v2411, %v2415
        %v2426 = vunpack.c.l.b16 %v2403
        %v2427 = vunpack.c.l.b16 %v2404
        %v2428 = vunpack.c.l.b16 %v2405
        %v2429 = vunpack.c.l.b16 %v2406
        %v2430 = vunpack.c.l.b16 %v2407
        %v2431 = vunpack.c.l.b16 %v2408
        %v2432 = vunpack.c.l.b16 %v2409
        %v2433 = vunpack.c.l.b16 %v2410
        %v2434 = vpack.c.b16 %v2427, %v2426
        %v2435 = vpack.c.b16 %v2429, %v2428
        %v2436 = vpack.c.b16 %v2431, %v2430
        %v2437 = vpack.c.b16 %v2433, %v2432
        %vm2442 = vcmask 523264
        %v2444 = vsel %vm2442, %v2402, 0
        %2446 = vmatprep.subr.bf16.mxu0 0
        %2447 = vmatpush1.bf16.msra.mxu0 0
        %2448 = vmatprep.subr.bf16.mxu0 0
        %2449 = vmatpush1.bf16.msra.mxu0 0
        %2450 = vmatprep.subr.bf16.mxu0 0
        %2451 = vmatpush1.bf16.msra.mxu0 0
        %2452 = vmatprep.subr.bf16.mxu0 0
        %2453 = vmatpush1.bf16.msra.mxu0 0
        %2454 = vmatprep.subr.bf16.mxu0 0
        %2455 = vmatpush1.bf16.msra.mxu0 %v2437
        %2456 = vmatprep.subr.bf16.mxu0 0
        %2457 = vmatpush1.bf16.msra.mxu0 %v2436
        %2458 = vmatprep.subr.bf16.mxu0 0
        %2459 = vmatpush1.bf16.msra.mxu0 %v2435
        %2460 = vmatprep.subr.bf16.mxu0 0
        %2461 = vmatpush1.bf16.msra.mxu0 %v2434
        %2462 = vmatprep.subr.bf16.mxu0 0
        %2463 = vmatpush2.bf16.msra.mxu0 0
        %2464 = vmatprep.subr.bf16.mxu0 0
        %2465 = vmatpush2.bf16.msra.mxu0 0
        %2466 = vmatprep.subr.bf16.mxu0 0
        %2467 = vmatpush2.bf16.msra.mxu0 0
        %2468 = vmatprep.subr.bf16.mxu0 0
        %2469 = vmatpush2.bf16.msra.mxu0 0
        %2470 = vmatprep.subr.bf16.mxu0 0
        %2471 = vmatpush2.bf16.msra.mxu0 0
        %2472 = vmatprep.subr.bf16.mxu0 0
        %2473 = vmatpush2.bf16.msra.mxu0 0
        %2474 = vmatprep.subr.bf16.mxu0 0
        %2475 = vmatpush2.bf16.msra.mxu0 0
        %2476 = vmatprep.subr.bf16.mxu0 0
        %2477 = vmatpush2.bf16.msra.mxu0 0
        %2478 = vmatprep.mubr.bf16.mxu0 0
        %2479 = vmatmul.mubr.bf16.gmra.mxu0 %v2444
        %v2480 = vpop.f32.mrf.mxu0
        %v2481 = vadd.f32 %v2416, %v2480
        %v2482 = vpop.f32.mrf.mxu0
        %v2483 = vpop.f32.mrf.mxu0
        %v2484 = vpop.f32.mrf.mxu0
        %2485 = vdwg.mxu0
        %v2486 = vadd.f32 %v2318, %v2481
        %2487 = vst.msk [vmem:[#allocation2] sm:$0xff] %vm882, %v2486
        %p2488 = scmp.eq.s32.totalorder %s38, 1
        // Predicated region
        $region101: #{tpu_custom_call.1} parent=95 // pred_check
          %p2489 = pneg %p2488
        $region102: #{tpu_custom_call.1} parent=95 // pred_check_branch
          %2491 = sbr.rel (%p2489) target = $region104
        $region103: #{tpu_custom_call.1} parent=95 // pred_region
          %v2492 = vld [vmem:[%s17] sm:$0x1]
          %v2493 = vld [vmem:[%s18] sm:$0x1]
          %v2494 = vsel %vm882, %v2486, 0.0
          %2495 = vadd.xlane.f32.xlu0 %v2494
          %v2496 = vpop.xlane.xlu0 %2495
          %v2497 = vmul.f32 %v2496, %v886
          %v2498 = vsub.f32 %v2486, %v2497
          %v2499 = vmul.f32 %v2498, %v2498
          %v2500 = vsel %vm882, %v2499, 0.0
          %2501 = vadd.xlane.f32.xlu0 %v2500
          %v2502 = vpop.xlane.xlu0 %2501
          %v2503 = vmul.f32 %v2502, %v886
          %v2504 = vadd.f32 %v2503, 1e-05
          %v2505 = vrsqrt.pop %v2504
          %v2506 = vmul.f32 %v2498, %v2505
          %v2508 = vlaneseq
          %v2509 = vshrl.u32 %v2508, 7
          %v2510 = vsub.s32 0, %v2509
          %v2511 = vrot.slane %v2492, %v2510
          %v2513 = vmul.f32 %v2506, %v2511
          %v2515 = vlaneseq
          %v2516 = vshrl.u32 %v2515, 7
          %v2517 = vsub.s32 0, %v2516
          %v2518 = vrot.slane %v2493, %v2517
          %v2520 = vadd.f32 %v2513, %v2518
          %2521 = vst.msk [vmem:[%s800] sm:$0xff] %vm882, %v2520
        $region104: #{tpu_custom_call.1} parent=95 // pred_fallthru
          _
        %s2522 = sand.u32 %s532, 1
        %s2523 = scalar_lea.sflag [#allocation4], %s2522
        %s2524 = sand.u32 %s532, 1
        %s2525 = smul.addr %s2524, 8
        %s2526 = scalar_lea.vmem [#allocation3], %s2525
        // Predicated region
        $region105: #{tpu_custom_call.1} parent=95 // pred_check
          %p2527 = pneg %p542
        $region106: #{tpu_custom_call.1} parent=95 // pred_check_branch
          %2529 = sbr.rel (%p2527) target = $region108
        $region107: #{tpu_custom_call.1} parent=95 // pred_region
          %s2531 = ssub.s32 128, 128
          %2532 = vsyncadd %s2523, %s2531
          %s2533 = smul.addr %s37, 128
          %s2534 = scalar_lea.hbm %s19, %s2533
          %s2536 = sshll.u32 %s2526, 4
          %s2537 = int_to_ptr.vmem [resolvable:$true] %s2536
          %2539 = dma.vmem_to_hbm [thread:$0]  %s2537, 128, %s2534, %s2523
        $region108: #{tpu_custom_call.1} parent=95 // pred_fallthru
          _
      $region96: #{tpu_custom_call.1} parent=5 // pred_fallthru
        _
      %p2540 = scmp.le.s32.totalorder 2, %s28
      // Predicated region
      $region109: #{tpu_custom_call.1} parent=5 // pred_check
        %p2541 = pneg %p2540
      $region110: #{tpu_custom_call.1} parent=5 // pred_check_branch
        %2543 = sbr.rel (%p2541) target = $region112
      $region111: #{tpu_custom_call.1} parent=5 // pred_region
        %s2544 = ssub.s32 %s28, 2
        // Predicated region
        $region113: #{tpu_custom_call.1} parent=111 // pred_check
          %p2545 = pneg %p548
        $region114: #{tpu_custom_call.1} parent=111 // pred_check_branch
          %2547 = sbr.rel (%p2545) target = $region116
        $region115: #{tpu_custom_call.1} parent=111 // pred_region
          %s2548 = sand.u32 %s533, 1
          %s2549 = scalar_lea.sflag [#allocation4], %s2548
          %s2550 = sand.u32 %s533, 1
          %s2551 = smul.addr %s2550, 8
          %s2552 = scalar_lea.vmem [#allocation3], %s2551
          %2553 = dma.done %s2549, 128
        $region116: #{tpu_custom_call.1} parent=111 // pred_fallthru
          _
      $region112: #{tpu_custom_call.1} parent=5 // pred_fallthru
        _
    $region6: #{tpu_custom_call.1} parent=1 // loop_footer
      %s32 = sadd.s32 1, %s28
    $region7: #{tpu_custom_call.1} parent=1 // loop_footer_branch
      %27 = sbr.rel target = $region3
    $region8: #{tpu_custom_call.1} parent=1 // loop_exit
      _
    %2554 = vsyncpa [#allocation4], 1
    %s2555 = scalar_lea.sflag [#allocation4], 1
    %2556 = vsyncpa %s2555, 1

</llo_original>
